<compile_context>
chip_gen: v6e
topology: v6e:2x2x1
jax: 0.10.0
libtpu: 0.0.40
codegen_flags: <defaults>
</compile_context>

<pallas_src>
import functools
import math

import jax
import jax.numpy as jnp
from jax.experimental import pallas as pl
from jax.experimental.pallas import tpu as pltpu

EPS = 1e-5                      # PyTorch InstanceNorm2d default eps
ACT_DTYPE = jnp.bfloat16        # activation / weight storage dtype
VMEM_LIMIT = 48 * 1024 * 1024   # fits v7x (64 MiB phys), > v5e 16 MiB default


def _row_chunk(h, w, target=4096):
    """Rows per in-kernel chunk so each chunk is ~<=4096 spatial positions."""
    th = max(1, min(h, target // w))
    while h % th:
        th -= 1
    return th


# ----------------------------------------------------------------------------
# Pallas kernel: fused 3x3 same-conv (+bias) [+InstanceNorm] [+act] [+residual]
# ----------------------------------------------------------------------------
def _conv3x3_kernel(x_ref, w_ref, b_ref, *rest, W, O, use_in, act, has_res,
                    th, nchunks):
    """Per grid step: one image.

    x_ref:   (1, H+2, W+2, Cin)  zero-padded NHWC input, bf16
    w_ref:   (9, Cin, O)         weights, tap-major (kh*3+kw), bf16
    b_ref:   (1, O)              bias, f32
    res_ref: (1, H*W, O)         optional residual (flattened spatial), bf16
    o_ref:   (1, H*W, O)         output (flattened spatial)
    acc_ref: (H*W, O) f32        scratch, only when use_in and nchunks > 1
    """
    if has_res:
        res_ref, *rest = rest
    else:
        res_ref = None
    o_ref = rest[0]
    multi = use_in and nchunks > 1
    acc_ref = rest[1] if multi else None

    bias = b_ref[...]                                   # (1, O) f32

    def activate(y):
        if act == "relu":
            return jnp.maximum(y, 0.0)
        if act == "sigmoid":
            return 1.0 / (1.0 + jnp.exp(-y))
        return y

    def finish(y, r0):
        # y: (th*W, O) f32 post-norm; r0: image-row offset of this chunk
        y = activate(y)
        if has_res:
            y = y + res_ref[0, r0 * W:r0 * W + th * W, :].astype(jnp.float32)
        o_ref[0, r0 * W:r0 * W + th * W, :] = y.astype(o_ref.dtype)

    def conv_chunk(r0):
        # 9 shifted matmuls accumulated in f32 (MXU: bf16 x bf16 -> f32)
        acc = jnp.zeros((th * W, O), jnp.float32)
        for kh in range(3):
            for kw in range(3):
                xt = x_ref[0, r0 + kh:r0 + kh + th, kw:kw + W, :]
                acc = acc + jnp.dot(xt.reshape(th * W, xt.shape[-1]),
                                    w_ref[kh * 3 + kw],
                                    preferred_element_type=jnp.float32)
        return acc + bias

    if not use_in:
        for c in range(nchunks):
            finish(conv_chunk(c * th), c * th)
        return

    if nchunks == 1:
        # whole image in one chunk: exact two-pass IN on the local accumulator
        acc = conv_chunk(0)
        mean = jnp.mean(acc, axis=0, keepdims=True)
        var = jnp.mean(jnp.square(acc - mean), axis=0, keepdims=True)
        finish((acc - mean) * jax.lax.rsqrt(var + EPS), 0)
        return

    # multi-chunk: stash pre-norm f32 rows + accumulate per-channel stats
    s = jnp.zeros((1, O), jnp.float32)
    ss = jnp.zeros((1, O), jnp.float32)
    for c in range(nchunks):
        acc = conv_chunk(c * th)
        acc_ref[c * th * W:(c + 1) * th * W, :] = acc
        s = s + jnp.sum(acc, axis=0, keepdims=True)
        ss = ss + jnp.sum(acc * acc, axis=0, keepdims=True)
    inv_n = 1.0 / float(nchunks * th * W)
    mean = s * inv_n
    var = jnp.maximum(ss * inv_n - mean * mean, 0.0)   # biased var (PyTorch IN)
    rstd = jax.lax.rsqrt(var + EPS)
    for c in range(nchunks):
        a = acc_ref[c * th * W:(c + 1) * th * W, :]
        finish((a - mean) * rstd, c * th)


@functools.lru_cache(maxsize=None)
def _build_conv_call(B, H, W, Cin, O, use_in, act, has_res, out_dtype):
    th = _row_chunk(H, W)
    nchunks = H // th
    kernel = functools.partial(_conv3x3_kernel, W=W, O=O, use_in=use_in,
                               act=act, has_res=has_res, th=th, nchunks=nchunks)
    in_specs = [
        pl.BlockSpec((1, H + 2, W + 2, Cin), lambda i: (i, 0, 0, 0)),
        pl.BlockSpec((9, Cin, O), lambda i: (0, 0, 0)),   # resident weights
        pl.BlockSpec((1, O), lambda i: (0, 0)),           # resident bias
    ]
    if has_res:
        in_specs.append(pl.BlockSpec((1, H * W, O), lambda i: (i, 0, 0)))
    scratch = ([pltpu.VMEM((H * W, O), jnp.float32)]
               if (use_in and nchunks > 1) else [])
    out_bytes = H * W * O * jnp.dtype(out_dtype).itemsize
    cost = pl.CostEstimate(
        flops=2 * B * H * W * 9 * Cin * O,
        transcendentals=(B * H * W * O if act == "sigmoid" else 0),
        bytes_accessed=B * ((H + 2) * (W + 2) * Cin * 2 + out_bytes
                            + (H * W * O * 2 if has_res else 0))
                       + 9 * Cin * O * 2 + O * 4)
    return pl.pallas_call(
        kernel,
        out_shape=jax.ShapeDtypeStruct((B, H * W, O), out_dtype),
        grid=(B,),
        in_specs=in_specs,
        out_specs=pl.BlockSpec((1, H * W, O), lambda i: (i, 0, 0)),
        scratch_shapes=scratch,
        compiler_params=pltpu.CompilerParams(
            dimension_semantics=("parallel",),        # megacore on v7x
            vmem_limit_bytes=VMEM_LIMIT),
        cost_estimate=cost,
    )


def conv3x3(x, w, b, *, use_in, act, res=None, out_dtype=ACT_DTYPE):
    """x: (B,H,W,Cin) NHWC; w: (9,Cin,O) tap-major; b: (O,). Returns (B,H,W,O)."""
    B, H, W, Cin = x.shape
    O = w.shape[-1]
    xp = jnp.pad(x.astype(ACT_DTYPE), ((0, 0), (1, 1), (1, 1), (0, 0)))
    call = _build_conv_call(B, H, W, Cin, O, use_in, act, res is not None,
                            out_dtype)
    args = [xp, w.astype(ACT_DTYPE), b.astype(jnp.float32).reshape(1, O)]
    if res is not None:
        args.append(res.reshape(B, H * W, O).astype(ACT_DTYPE))
    return call(*args).reshape(B, H, W, O)


# ----------------------------------------------------------------------------
# Pallas kernel: fc (Linear).  (B,128)@(128,1024) is tiny -> single block.
# ----------------------------------------------------------------------------
def _fc_kernel(x_ref, w_ref, b_ref, o_ref):
    y = jnp.dot(x_ref[...], w_ref[...], preferred_element_type=jnp.float32)
    o_ref[...] = (y + b_ref[...]).astype(o_ref.dtype)


def fc(x, w, b):
    B, K = x.shape
    N = w.shape[1]
    return pl.pallas_call(
        _fc_kernel,
        out_shape=jax.ShapeDtypeStruct((B, N), jnp.float32),
        grid=(1,),
        in_specs=[pl.BlockSpec((B, K), lambda i: (0, 0)),
                  pl.BlockSpec((K, N), lambda i: (0, 0)),
                  pl.BlockSpec((1, N), lambda i: (0, 0))],
        out_specs=pl.BlockSpec((B, N), lambda i: (0, 0)),
        compiler_params=pltpu.CompilerParams(
            dimension_semantics=("arbitrary",),
            vmem_limit_bytes=VMEM_LIMIT),
    )(x, w, b.reshape(1, N))


# ----------------------------------------------------------------------------
# Module glue (MUNIT Conv2dBlock / ResBlocks semantics)
# ----------------------------------------------------------------------------
def conv_block(x, p, *, norm, act, res=None, out_dtype=ACT_DTYPE):
    """Conv2dBlock: zero-pad -> conv(bias) -> [InstanceNorm] -> [act] (+res)."""
    w, b = p
    return conv3x3(x, w, b, use_in=(norm == 'in'), act=act, res=res,
                   out_dtype=out_dtype)


def res_block(x, p1, p2, *, norm):
    y = conv_block(x, p1, norm=norm, act='relu')
    return conv_block(y, p2, norm=norm, act='none', res=x)   # fused residual


def res_blocks(x, pairs, *, norm):
    for p1, p2 in pairs:
        x = res_block(x, p1, p2, norm=norm)
    return x


def upconv(x, p):
    # TODO(synk): upconv definition not in the spec; assumed
    # Upsample(scale=2, nearest) -> Conv2d(k3,s1,p1,bias) -> ReLU (glue upsample).
    x = jnp.repeat(jnp.repeat(x, 2, axis=1), 2, axis=2)
    return conv_block(x, p, norm='none', act='relu')


# ----------------------------------------------------------------------------
# Deterministic parameter init (kaiming-normal-ish weights, zero bias)
# ----------------------------------------------------------------------------
def _conv_param(key, cin, cout):
    std = math.sqrt(2.0 / (cin * 9))
    # Tap-major layout (kh*3+kw, Cin, Cout).  To port PyTorch weights
    # (O,Cin,3,3): w.transpose(2,3,1,0).reshape(9,Cin,O).
    w = (std * jax.random.normal(key, (3, 3, cin, cout), jnp.float32)
         ).reshape(9, cin, cout).astype(ACT_DTYPE)
    return (w, jnp.zeros((cout,), jnp.float32))


def init_params(key, cin_l=64, cin_sky=64, cin_sun=64, cout=3):
    specs = [('conv1', 8, 64)]
    for i, ch in zip(range(1, 9), (64, 128, 128, 128, 128, 128, 64, 32)):
        specs += [(f'res{i}_a1', ch, ch), (f'res{i}_a2', ch, ch),
                  (f'res{i}_b1', ch, ch), (f'res{i}_b2', ch, ch)]
    specs += [('up1', 64, 64), ('conv2', 64, 128), ('up2', 128, 128),
              ('conv3', 128, 128), ('up3', 128, 128), ('conv4', 128, 128),
              ('conv5', 128 + cin_sun + 1, 128), ('conv6', 128, 128),
              ('conv7', 128, 64), ('conv8', 64, 32),
              ('outc1', 32, 16), ('outc2', 16, cout)]
    keys = jax.random.split(key, len(specs) + 1)
    cin_fc = cin_l + cin_sky
    # fc stored as (in_features, out_features); PyTorch Linear weight is its T.
    params = {'fc': ((1.0 / math.sqrt(cin_fc)) *
                     jax.random.normal(keys[0], (cin_fc, 1024), jnp.float32),
                     jnp.zeros((1024,), jnp.float32))}
    for k, (name, ci, co) in zip(keys[1:], specs):
        params[name] = _conv_param(k, ci, co)
    return params


def _pairs(p, name):
    return [(p[name + '_a1'], p[name + '_a2']),
            (p[name + '_b1'], p[name + '_b2'])]


# ----------------------------------------------------------------------------
# LocalAppSplitRenderer forward
# ----------------------------------------------------------------------------
def local_app_split_renderer_forward(params, input_l, input_sky, input_sun,
                                     input_posmask):
    p = params
    B = input_l.shape[0]
    feat = fc(jnp.concatenate([input_l, input_sky], axis=1), *p['fc'])
    # torch reshape(-1,8,8,16) is NCHW (C=8,H=8,W=16) -> convert to NHWC.
    out = feat.reshape(B, 8, 8, 16).transpose(0, 2, 3, 1)

    out = conv_block(out, p['conv1'], norm='in', act='relu')
    out = res_blocks(out, _pairs(p, 'res1'), norm='in')
    out = upconv(out, p['up1'])
    out = conv_block(out, p['conv2'], norm='in', act='relu')
    out = res_blocks(out, _pairs(p, 'res2'), norm='in')
    out = upconv(out, p['up2'])
    out = conv_block(out, p['conv3'], norm='in', act='relu')
    out = res_blocks(out, _pairs(p, 'res3'), norm='in')
    out = upconv(out, p['up3'])
    out = conv_block(out, p['conv4'], norm='in', act='relu')
    out = res_blocks(out, _pairs(p, 'res4'), norm='none')

    # cat([features, broadcast sun, pos mask], channel axis) -> 193 channels
    sun = jnp.broadcast_to(input_sun.astype(ACT_DTYPE)[:, None, None, :],
                           (B, 64, 128, input_sun.shape[1]))
    mask = input_posmask.reshape(B, 64, 128, 1).astype(ACT_DTYPE)
    out = jnp.concatenate([out, sun, mask], axis=-1)

    out = conv_block(out, p['conv5'], norm='in', act='relu')
    out = res_blocks(out, _pairs(p, 'res5'), norm='in')
    out = conv_block(out, p['conv6'], norm='in', act='relu')
    out = res_blocks(out, _pairs(p, 'res6'), norm='in')
    out = conv_block(out, p['conv7'], norm='in', act='relu')
    out = res_blocks(out, _pairs(p, 'res7'), norm='in')
    out = conv_block(out, p['conv8'], norm='in', act='relu')
    out = res_blocks(out, _pairs(p, 'res8'), norm='in')
    out = conv_block(out, p['outc1'], norm='none', act='relu')
    # TODO(synk): outputConv definition not in the spec; assumed Conv2d(16,cout,3,1,1)+Sigmoid.
    out = conv_block(out, p['outc2'], norm='none', act='sigmoid',
                     out_dtype=jnp.float32)
    return out.transpose(0, 3, 1, 2)   # NCHW (B, cout, 64, 128), f32


if __name__ == "__main__":
    key = jax.random.PRNGKey(0)
    kp, k1, k2, k3, k4 = jax.random.split(key, 5)

    # quick correctness check of the fused conv kernel vs XLA conv (no norm/act)
    cx = jax.random.normal(jax.random.PRNGKey(1), (2, 8, 16, 16), jnp.float32)
    cw, cb = _conv_param(jax.random.PRNGKey(2), 16, 32)
    got = conv3x3(cx, cw, cb, use_in=False, act='none', out_dtype=jnp.float32)
    ref = jax.lax.conv_general_dilated(
        cx.astype(ACT_DTYPE).astype(jnp.float32),
        cw.reshape(3, 3, 16, 32).astype(jnp.float32),
        (1, 1), ((1, 1), (1, 1)),
        dimension_numbers=('NHWC', 'HWIO', 'NHWC')) + cb
    assert jnp.allclose(got, ref, atol=2e-2, rtol=2e-2), "conv kernel mismatch"

    params = init_params(kp)
    B = 2
    input_l = jax.random.normal(k1, (B, 64), jnp.float32)
    input_sky = jax.random.normal(k2, (B, 64), jnp.float32)
    input_sun = jax.random.normal(k3, (B, 64), jnp.float32)
    input_posmask = (jax.random.uniform(k4, (B, 64, 128)) > 0.5).astype(jnp.float32)

    fwd = jax.jit(local_app_split_renderer_forward)
    out = fwd(params, input_l, input_sky, input_sun, input_posmask)
    out = jax.block_until_ready(out)
    assert out.shape == (B, 3, 64, 128), out.shape
    assert bool(jnp.all(jnp.isfinite(out)))
    print("KERNEL_OK")
</pallas_src>

<mosaic_0001>
module attributes {stable_mosaic.version = 11 : i64} {
  func.func @_conv3x3_kernel(%arg0: i32, %arg1: memref<1x10x18x16xbf16, #tpu.memory_space<vmem>>, %arg2: memref<9x16x32xbf16, #tpu.memory_space<vmem>>, %arg3: memref<1x32xf32, #tpu.memory_space<vmem>>, %arg4: memref<1x128x32xf32, #tpu.memory_space<vmem>>) attributes {dimension_semantics = [#tpu.dimension_semantics<parallel>], iteration_bounds = array<i64: 2>, scalar_prefetch = 0 : i64, scratch_operands = 0 : i64, tpu.core_type = #tpu.core_type<tc>, window_params = [{transform_indices = @transform_0, window_bounds = array<i64: 1, 10, 18, 16>}, {pipeline_mode = #tpu.pipeline_mode<synchronous>, transform_indices = @transform_1, window_bounds = array<i64: 9, 16, 32>}, {pipeline_mode = #tpu.pipeline_mode<synchronous>, transform_indices = @transform_2, window_bounds = array<i64: 1, 32>}, {transform_indices = @transform_3, window_bounds = array<i64: 1, 128, 32>}]} {
    %c0 = arith.constant 0 : index
    %c0_0 = arith.constant 0 : index
    %0 = vector.load %arg3[%c0, %c0_0] : memref<1x32xf32, #tpu.memory_space<vmem>>, vector<1x32xf32>
    %cst = arith.constant 0.000000e+00 : f32
    %1 = vector.broadcast %cst : f32 to vector<128x32xf32>
    %c0_1 = arith.constant 0 : index
    %c0_2 = arith.constant 0 : index
    %c0_3 = arith.constant 0 : index
    %c0_4 = arith.constant 0 : index
    %2 = vector.load %arg1[%c0_1, %c0_2, %c0_3, %c0_4] : memref<1x10x18x16xbf16, #tpu.memory_space<vmem>>, vector<1x8x16x16xbf16>
    %3 = vector.shape_cast %2 : vector<1x8x16x16xbf16> to vector<8x16x16xbf16>
    %4 = vector.shape_cast %3 : vector<8x16x16xbf16> to vector<128x16xbf16>
    %c0_5 = arith.constant 0 : index
    %c0_6 = arith.constant 0 : index
    %c0_7 = arith.constant 0 : index
    %5 = vector.load %arg2[%c0_5, %c0_6, %c0_7] : memref<9x16x32xbf16, #tpu.memory_space<vmem>>, vector<1x16x32xbf16>
    %6 = vector.shape_cast %5 : vector<1x16x32xbf16> to vector<16x32xbf16>
    %cst_8 = arith.constant dense<0.000000e+00> : vector<128x32xf32>
    %7 = tpu.matmul %4, %6, %cst_8 {dimension_numbers = #tpu.dot_dimension_numbers<[1], [0], [0], [1], [0, 0, 1, 1], [], []>} : vector<128x16xbf16>, vector<16x32xbf16>, vector<128x32xf32> -> vector<128x32xf32>
    %8 = arith.addf %1, %7 : vector<128x32xf32>
    %c0_9 = arith.constant 0 : index
    %c0_10 = arith.constant 0 : index
    %c1 = arith.constant 1 : index
    %c0_11 = arith.constant 0 : index
    %9 = vector.load %arg1[%c0_9, %c0_10, %c1, %c0_11] : memref<1x10x18x16xbf16, #tpu.memory_space<vmem>>, vector<1x8x16x16xbf16>
    %10 = vector.shape_cast %9 : vector<1x8x16x16xbf16> to vector<8x16x16xbf16>
    %11 = vector.shape_cast %10 : vector<8x16x16xbf16> to vector<128x16xbf16>
    %c1_12 = arith.constant 1 : index
    %c0_13 = arith.constant 0 : index
    %c0_14 = arith.constant 0 : index
    %12 = vector.load %arg2[%c1_12, %c0_13, %c0_14] : memref<9x16x32xbf16, #tpu.memory_space<vmem>>, vector<1x16x32xbf16>
    %13 = vector.shape_cast %12 : vector<1x16x32xbf16> to vector<16x32xbf16>
    %cst_15 = arith.constant dense<0.000000e+00> : vector<128x32xf32>
    %14 = tpu.matmul %11, %13, %cst_15 {dimension_numbers = #tpu.dot_dimension_numbers<[1], [0], [0], [1], [0, 0, 1, 1], [], []>} : vector<128x16xbf16>, vector<16x32xbf16>, vector<128x32xf32> -> vector<128x32xf32>
    %15 = arith.addf %8, %14 : vector<128x32xf32>
    %c0_16 = arith.constant 0 : index
    %c0_17 = arith.constant 0 : index
    %c2 = arith.constant 2 : index
    %c0_18 = arith.constant 0 : index
    %16 = vector.load %arg1[%c0_16, %c0_17, %c2, %c0_18] : memref<1x10x18x16xbf16, #tpu.memory_space<vmem>>, vector<1x8x16x16xbf16>
    %17 = vector.shape_cast %16 : vector<1x8x16x16xbf16> to vector<8x16x16xbf16>
    %18 = vector.shape_cast %17 : vector<8x16x16xbf16> to vector<128x16xbf16>
    %c2_19 = arith.constant 2 : index
    %c0_20 = arith.constant 0 : index
    %c0_21 = arith.constant 0 : index
    %19 = vector.load %arg2[%c2_19, %c0_20, %c0_21] : memref<9x16x32xbf16, #tpu.memory_space<vmem>>, vector<1x16x32xbf16>
    %20 = vector.shape_cast %19 : vector<1x16x32xbf16> to vector<16x32xbf16>
    %cst_22 = arith.constant dense<0.000000e+00> : vector<128x32xf32>
    %21 = tpu.matmul %18, %20, %cst_22 {dimension_numbers = #tpu.dot_dimension_numbers<[1], [0], [0], [1], [0, 0, 1, 1], [], []>} : vector<128x16xbf16>, vector<16x32xbf16>, vector<128x32xf32> -> vector<128x32xf32>
    %22 = arith.addf %15, %21 : vector<128x32xf32>
    %c0_23 = arith.constant 0 : index
    %c1_24 = arith.constant 1 : index
    %c0_25 = arith.constant 0 : index
    %c0_26 = arith.constant 0 : index
    %23 = vector.load %arg1[%c0_23, %c1_24, %c0_25, %c0_26] : memref<1x10x18x16xbf16, #tpu.memory_space<vmem>>, vector<1x8x16x16xbf16>
    %24 = vector.shape_cast %23 : vector<1x8x16x16xbf16> to vector<8x16x16xbf16>
    %25 = vector.shape_cast %24 : vector<8x16x16xbf16> to vector<128x16xbf16>
    %c3 = arith.constant 3 : index
    %c0_27 = arith.constant 0 : index
    %c0_28 = arith.constant 0 : index
    %26 = vector.load %arg2[%c3, %c0_27, %c0_28] : memref<9x16x32xbf16, #tpu.memory_space<vmem>>, vector<1x16x32xbf16>
    %27 = vector.shape_cast %26 : vector<1x16x32xbf16> to vector<16x32xbf16>
    %cst_29 = arith.constant dense<0.000000e+00> : vector<128x32xf32>
    %28 = tpu.matmul %25, %27, %cst_29 {dimension_numbers = #tpu.dot_dimension_numbers<[1], [0], [0], [1], [0, 0, 1, 1], [], []>} : vector<128x16xbf16>, vector<16x32xbf16>, vector<128x32xf32> -> vector<128x32xf32>
    %29 = arith.addf %22, %28 : vector<128x32xf32>
    %c0_30 = arith.constant 0 : index
    %c1_31 = arith.constant 1 : index
    %c1_32 = arith.constant 1 : index
    %c0_33 = arith.constant 0 : index
    %30 = vector.load %arg1[%c0_30, %c1_31, %c1_32, %c0_33] : memref<1x10x18x16xbf16, #tpu.memory_space<vmem>>, vector<1x8x16x16xbf16>
    %31 = vector.shape_cast %30 : vector<1x8x16x16xbf16> to vector<8x16x16xbf16>
    %32 = vector.shape_cast %31 : vector<8x16x16xbf16> to vector<128x16xbf16>
    %c4 = arith.constant 4 : index
    %c0_34 = arith.constant 0 : index
    %c0_35 = arith.constant 0 : index
    %33 = vector.load %arg2[%c4, %c0_34, %c0_35] : memref<9x16x32xbf16, #tpu.memory_space<vmem>>, vector<1x16x32xbf16>
    %34 = vector.shape_cast %33 : vector<1x16x32xbf16> to vector<16x32xbf16>
    %cst_36 = arith.constant dense<0.000000e+00> : vector<128x32xf32>
    %35 = tpu.matmul %32, %34, %cst_36 {dimension_numbers = #tpu.dot_dimension_numbers<[1], [0], [0], [1], [0, 0, 1, 1], [], []>} : vector<128x16xbf16>, vector<16x32xbf16>, vector<128x32xf32> -> vector<128x32xf32>
    %36 = arith.addf %29, %35 : vector<128x32xf32>
    %c0_37 = arith.constant 0 : index
    %c1_38 = arith.constant 1 : index
    %c2_39 = arith.constant 2 : index
    %c0_40 = arith.constant 0 : index
    %37 = vector.load %arg1[%c0_37, %c1_38, %c2_39, %c0_40] : memref<1x10x18x16xbf16, #tpu.memory_space<vmem>>, vector<1x8x16x16xbf16>
    %38 = vector.shape_cast %37 : vector<1x8x16x16xbf16> to vector<8x16x16xbf16>
    %39 = vector.shape_cast %38 : vector<8x16x16xbf16> to vector<128x16xbf16>
    %c5 = arith.constant 5 : index
    %c0_41 = arith.constant 0 : index
    %c0_42 = arith.constant 0 : index
    %40 = vector.load %arg2[%c5, %c0_41, %c0_42] : memref<9x16x32xbf16, #tpu.memory_space<vmem>>, vector<1x16x32xbf16>
    %41 = vector.shape_cast %40 : vector<1x16x32xbf16> to vector<16x32xbf16>
    %cst_43 = arith.constant dense<0.000000e+00> : vector<128x32xf32>
    %42 = tpu.matmul %39, %41, %cst_43 {dimension_numbers = #tpu.dot_dimension_numbers<[1], [0], [0], [1], [0, 0, 1, 1], [], []>} : vector<128x16xbf16>, vector<16x32xbf16>, vector<128x32xf32> -> vector<128x32xf32>
    %43 = arith.addf %36, %42 : vector<128x32xf32>
    %c0_44 = arith.constant 0 : index
    %c2_45 = arith.constant 2 : index
    %c0_46 = arith.constant 0 : index
    %c0_47 = arith.constant 0 : index
    %44 = vector.load %arg1[%c0_44, %c2_45, %c0_46, %c0_47] : memref<1x10x18x16xbf16, #tpu.memory_space<vmem>>, vector<1x8x16x16xbf16>
    %45 = vector.shape_cast %44 : vector<1x8x16x16xbf16> to vector<8x16x16xbf16>
    %46 = vector.shape_cast %45 : vector<8x16x16xbf16> to vector<128x16xbf16>
    %c6 = arith.constant 6 : index
    %c0_48 = arith.constant 0 : index
    %c0_49 = arith.constant 0 : index
    %47 = vector.load %arg2[%c6, %c0_48, %c0_49] : memref<9x16x32xbf16, #tpu.memory_space<vmem>>, vector<1x16x32xbf16>
    %48 = vector.shape_cast %47 : vector<1x16x32xbf16> to vector<16x32xbf16>
    %cst_50 = arith.constant dense<0.000000e+00> : vector<128x32xf32>
    %49 = tpu.matmul %46, %48, %cst_50 {dimension_numbers = #tpu.dot_dimension_numbers<[1], [0], [0], [1], [0, 0, 1, 1], [], []>} : vector<128x16xbf16>, vector<16x32xbf16>, vector<128x32xf32> -> vector<128x32xf32>
    %50 = arith.addf %43, %49 : vector<128x32xf32>
    %c0_51 = arith.constant 0 : index
    %c2_52 = arith.constant 2 : index
    %c1_53 = arith.constant 1 : index
    %c0_54 = arith.constant 0 : index
    %51 = vector.load %arg1[%c0_51, %c2_52, %c1_53, %c0_54] : memref<1x10x18x16xbf16, #tpu.memory_space<vmem>>, vector<1x8x16x16xbf16>
    %52 = vector.shape_cast %51 : vector<1x8x16x16xbf16> to vector<8x16x16xbf16>
    %53 = vector.shape_cast %52 : vector<8x16x16xbf16> to vector<128x16xbf16>
    %c7 = arith.constant 7 : index
    %c0_55 = arith.constant 0 : index
    %c0_56 = arith.constant 0 : index
    %54 = vector.load %arg2[%c7, %c0_55, %c0_56] : memref<9x16x32xbf16, #tpu.memory_space<vmem>>, vector<1x16x32xbf16>
    %55 = vector.shape_cast %54 : vector<1x16x32xbf16> to vector<16x32xbf16>
    %cst_57 = arith.constant dense<0.000000e+00> : vector<128x32xf32>
    %56 = tpu.matmul %53, %55, %cst_57 {dimension_numbers = #tpu.dot_dimension_numbers<[1], [0], [0], [1], [0, 0, 1, 1], [], []>} : vector<128x16xbf16>, vector<16x32xbf16>, vector<128x32xf32> -> vector<128x32xf32>
    %57 = arith.addf %50, %56 : vector<128x32xf32>
    %c0_58 = arith.constant 0 : index
    %c2_59 = arith.constant 2 : index
    %c2_60 = arith.constant 2 : index
    %c0_61 = arith.constant 0 : index
    %58 = vector.load %arg1[%c0_58, %c2_59, %c2_60, %c0_61] : memref<1x10x18x16xbf16, #tpu.memory_space<vmem>>, vector<1x8x16x16xbf16>
    %59 = vector.shape_cast %58 : vector<1x8x16x16xbf16> to vector<8x16x16xbf16>
    %60 = vector.shape_cast %59 : vector<8x16x16xbf16> to vector<128x16xbf16>
    %c8 = arith.constant 8 : index
    %c0_62 = arith.constant 0 : index
    %c0_63 = arith.constant 0 : index
    %61 = vector.load %arg2[%c8, %c0_62, %c0_63] : memref<9x16x32xbf16, #tpu.memory_space<vmem>>, vector<1x16x32xbf16>
    %62 = vector.shape_cast %61 : vector<1x16x32xbf16> to vector<16x32xbf16>
    %cst_64 = arith.constant dense<0.000000e+00> : vector<128x32xf32>
    %63 = tpu.matmul %60, %62, %cst_64 {dimension_numbers = #tpu.dot_dimension_numbers<[1], [0], [0], [1], [0, 0, 1, 1], [], []>} : vector<128x16xbf16>, vector<16x32xbf16>, vector<128x32xf32> -> vector<128x32xf32>
    %64 = arith.addf %57, %63 : vector<128x32xf32>
    %65 = vector.broadcast %0 : vector<1x32xf32> to vector<128x32xf32>
    %66 = arith.addf %64, %65 : vector<128x32xf32>
    %c0_65 = arith.constant 0 : index
    %c0_66 = arith.constant 0 : index
    %c0_67 = arith.constant 0 : index
    %67 = vector.load %arg4[%c0_65, %c0_66, %c0_67] : memref<1x128x32xf32, #tpu.memory_space<vmem>>, vector<1x128x32xf32>
    %68 = vector.shape_cast %67 : vector<1x128x32xf32> to vector<128x32xf32>
    %69 = vector.shape_cast %66 : vector<128x32xf32> to vector<1x128x32xf32>
    tpu.vector_store %arg4[%c0_65, %c0_66, %c0_67], %69 {strides = array<i32>} : memref<1x128x32xf32, #tpu.memory_space<vmem>>, vector<1x128x32xf32>,
    return
  }
  func.func @transform_0(%arg0: i32) -> (i32, i32, i32, i32) {
    %c0_i32 = arith.constant 0 : i32
    %c0_i32_0 = arith.constant 0 : i32
    %c0_i32_1 = arith.constant 0 : i32
    %c0_i32_2 = arith.constant 0 : i32
    return %arg0, %c0_i32, %c0_i32_0, %c0_i32_1 : i32, i32, i32, i32
  }
  func.func @transform_1(%arg0: i32) -> (i32, i32, i32) {
    %c0_i32 = arith.constant 0 : i32
    %c0_i32_0 = arith.constant 0 : i32
    %c0_i32_1 = arith.constant 0 : i32
    %c0_i32_2 = arith.constant 0 : i32
    return %c0_i32, %c0_i32_0, %c0_i32_1 : i32, i32, i32
  }
  func.func @transform_2(%arg0: i32) -> (i32, i32) {
    %c0_i32 = arith.constant 0 : i32
    %c0_i32_0 = arith.constant 0 : i32
    %c0_i32_1 = arith.constant 0 : i32
    return %c0_i32, %c0_i32_0 : i32, i32
  }
  func.func @transform_3(%arg0: i32) -> (i32, i32, i32) {
    %c0_i32 = arith.constant 0 : i32
    %c0_i32_0 = arith.constant 0 : i32
    %c0_i32_1 = arith.constant 0 : i32
    return %arg0, %c0_i32, %c0_i32_0 : i32, i32, i32
  }
}

</mosaic_0001>

<llo_original>
// kernel: tpu_custom_call.1
$region0: #{tpu_custom_call.1}
  #allocation0 [shape = 'u32[]', space=smem, size = 0x4, offset = 0x4, fixed_abs, tag = 'smem constant byte address 0x4 - core index']
  #allocation1 [shape = 'u32[144,128]{1,0:T(1,128)}', space=vmem, size = 0x12000, scoped, tag = 'internal scratch']
  %s0 = inlined_call_operand.vmem [shape: bf16[2,10,18,16], index: 0, kind: input, shape index: {}]
  %s1 = inlined_call_operand.vmem [shape: bf16[9,16,32], index: 1, kind: input, shape index: {}]
  %s2 = inlined_call_operand.vmem [shape: f32[1,32], index: 2, kind: input, shape index: {}]
  %s3 = inlined_call_operand.vmem [shape: f32[2,128,32], index: 3, kind: output, shape index: {}]
  %s4 = sld [smem:[#allocation0]]
  $region45: #{tpu_custom_call.1} parent=0
    _
  %s6 = ssub.s32 1, %s4
  %s7 = scalar_select 0, %s6, %s4
  loop: start=0, step=1, limit=4
  $region2: #{tpu_custom_call.1} parent=0 // loop_pre_header
    _
  $region3: #{tpu_custom_call.1} parent=0 // loop_header
    %s9 = sphi 0, %s13
    %p10 = scmp.ge.s32.totalorder %s9, 4
    %s19 = sphi 0, %s21
    %s22 = sphi 0, %s19
    %s23 = sphi 0, %s22
    %s39 = sphi 0, %s23
    %s43 = sphi 0, %s43
    %s45 = sphi 0, %s43
    %s46 = sphi 0, %s45
    %s60 = sphi 0, %s46
    %s64 = sphi 0, %s64
    %s66 = sphi 0, %s64
    %s67 = sphi 0, %s66
    %s81 = sphi 0, %s67
    %s87 = sphi 0, %s89
    %s90 = sphi 0, %s87
    %s91 = sphi 0, %s90
    %s107 = sphi 0, %s91
  $region4: #{tpu_custom_call.1} parent=0 // loop_header_branch
    %12 = sbr.rel (%p10) target = $region8
  $region5: #{tpu_custom_call.1} parent=0 // loop_body
    %s14 = ssub.s32 %s9, 1
    %s15 = ssub.s32 %s9, 2
    %s16 = sadd.s32 %s9, 1
    %s17 = ssub.s32 %s9, %s16
    %p18 = scmp.eq.s32.totalorder %s17, 0
    %s20 = sadd.s32 %s19, 1
    %s21 = scalar_select %p18, %s19, %s20
    %p24 = pneg %p18
    %p25 = scmp.eq.s32.totalorder %s9, 1
    %p26 = por %p24, %p25
    %p27 = scmp.ne.s32.totalorder %s19, %s22
    %p28 = scmp.eq.s32.totalorder %s9, 0
    %p29 = por %p27, %p28
    %p30 = scmp.ne.s32.totalorder %s19, %s22
    %p31 = scmp.eq.s32.totalorder %s14, 1
    %p32 = por %p30, %p31
    %p33 = scmp.ne.s32.totalorder %s22, %s23
    %p34 = scmp.eq.s32.totalorder %s14, 0
    %p35 = por %p33, %p34
    %p36 = scmp.ne.s32.totalorder %s22, %s23
    %p37 = scmp.eq.s32.totalorder %s15, 1
    %p38 = por %p36, %p37
    %p40 = scmp.ne.s32.totalorder %s23, %s39
    %p41 = scmp.eq.s32.totalorder %s15, 0
    %p42 = por %p40, %p41
    %s44 = sadd.s32 %s43, 1
    %p47 = scmp.eq.s32.totalorder %s9, 1
    %p48 = scmp.ne.s32.totalorder %s43, %s45
    %p49 = scmp.eq.s32.totalorder %s9, 0
    %p50 = por %p48, %p49
    %p51 = scmp.ne.s32.totalorder %s43, %s45
    %p52 = scmp.eq.s32.totalorder %s14, 1
    %p53 = por %p51, %p52
    %p54 = scmp.ne.s32.totalorder %s45, %s46
    %p55 = scmp.eq.s32.totalorder %s14, 0
    %p56 = por %p54, %p55
    %p57 = scmp.ne.s32.totalorder %s45, %s46
    %p58 = scmp.eq.s32.totalorder %s15, 1
    %p59 = por %p57, %p58
    %p61 = scmp.ne.s32.totalorder %s46, %s60
    %p62 = scmp.eq.s32.totalorder %s15, 0
    %p63 = por %p61, %p62
    %s65 = sadd.s32 %s64, 1
    %p68 = scmp.eq.s32.totalorder %s9, 1
    %p69 = scmp.ne.s32.totalorder %s64, %s66
    %p70 = scmp.eq.s32.totalorder %s9, 0
    %p71 = por %p69, %p70
    %p72 = scmp.ne.s32.totalorder %s64, %s66
    %p73 = scmp.eq.s32.totalorder %s14, 1
    %p74 = por %p72, %p73
    %p75 = scmp.ne.s32.totalorder %s66, %s67
    %p76 = scmp.eq.s32.totalorder %s14, 0
    %p77 = por %p75, %p76
    %p78 = scmp.ne.s32.totalorder %s66, %s67
    %p79 = scmp.eq.s32.totalorder %s15, 1
    %p80 = por %p78, %p79
    %p82 = scmp.ne.s32.totalorder %s67, %s81
    %p83 = scmp.eq.s32.totalorder %s15, 0
    %p84 = por %p82, %p83
    %s85 = ssub.s32 %s9, %s16
    %p86 = scmp.eq.s32.totalorder %s85, 0
    %s88 = sadd.s32 %s87, 1
    %s89 = scalar_select %p86, %s87, %s88
    %p92 = pneg %p86
    %p93 = scmp.eq.s32.totalorder %s9, 1
    %p94 = por %p92, %p93
    %p95 = scmp.ne.s32.totalorder %s87, %s90
    %p96 = scmp.eq.s32.totalorder %s9, 0
    %p97 = por %p95, %p96
    %p98 = scmp.ne.s32.totalorder %s87, %s90
    %p99 = scmp.eq.s32.totalorder %s14, 1
    %p100 = por %p98, %p99
    %p101 = scmp.ne.s32.totalorder %s90, %s91
    %p102 = scmp.eq.s32.totalorder %s14, 0
    %p103 = por %p101, %p102
    %p104 = scmp.ne.s32.totalorder %s90, %s91
    %p105 = scmp.eq.s32.totalorder %s15, 1
    %p106 = por %p104, %p105
    %p108 = scmp.ne.s32.totalorder %s91, %s107
    %p109 = scmp.eq.s32.totalorder %s15, 0
    %p110 = por %p108, %p109
    %p111 = scmp.le.s32.totalorder 1, %s9
    %p112 = scmp.lt.s32.totalorder %s9, 3
    %p113 = pnand %p111, %p112
    %p114 = pneg %p113
    // Predicated region
    $region9: #{tpu_custom_call.1} parent=5 // pred_check
      _
    $region10: #{tpu_custom_call.1} parent=5 // pred_check_branch
      %116 = sbr.rel (%p113) target = $region12
    $region11: #{tpu_custom_call.1} parent=5 // pred_region
      %s117 = ssub.s32 %s9, 1
      // Predicated region
      $region13: #{tpu_custom_call.1} parent=11 // pred_check
        %p118 = pneg %p56
      $region14: #{tpu_custom_call.1} parent=11 // pred_check_branch
        %120 = sbr.rel (%p118) target = $region16
      $region15: #{tpu_custom_call.1} parent=11 // pred_region
        _
      $region16: #{tpu_custom_call.1} parent=11 // pred_fallthru
        _
      // Predicated region
      $region17: #{tpu_custom_call.1} parent=11 // pred_check
        %p121 = pneg %p77
      $region18: #{tpu_custom_call.1} parent=11 // pred_check_branch
        %123 = sbr.rel (%p121) target = $region20
      $region19: #{tpu_custom_call.1} parent=11 // pred_region
        _
      $region20: #{tpu_custom_call.1} parent=11 // pred_fallthru
        _
    $region12: #{tpu_custom_call.1} parent=5 // pred_fallthru
      _
    %p124 = scmp.lt.s32.totalorder %s9, 2
    // Predicated region
    $region21: #{tpu_custom_call.1} parent=5 // pred_check
      %p125 = pneg %p124
    $region22: #{tpu_custom_call.1} parent=5 // pred_check_branch
      %127 = sbr.rel (%p125) target = $region24
    $region23: #{tpu_custom_call.1} parent=5 // pred_region
      // Predicated region
      $region25: #{tpu_custom_call.1} parent=23 // pred_check
        %p128 = pneg %p29
      $region26: #{tpu_custom_call.1} parent=23 // pred_check_branch
        %130 = sbr.rel (%p128) target = $region28
      $region27: #{tpu_custom_call.1} parent=23 // pred_region
        %p131 = scmp.lt.s32.totalorder %s9, 1
        %s132 = scalar_select %p131, %s9, 1
        %s133 = smul.addr %s132, 30
        %s134 = smul.addr %s133, 4
        %s135 = scalar_lea.vmem %s0, %s134
      $region28: #{tpu_custom_call.1} parent=23 // pred_fallthru
        _
    $region24: #{tpu_custom_call.1} parent=5 // pred_fallthru
      _
    %p136 = scmp.le.s32.totalorder 1, %s9
    %p137 = scmp.lt.s32.totalorder %s9, 3
    %p138 = pnand %p136, %p137
    %p139 = pneg %p138
    // Predicated region
    $region29: #{tpu_custom_call.1} parent=5 // pred_check
      _
    $region30: #{tpu_custom_call.1} parent=5 // pred_check_branch
      %141 = sbr.rel (%p138) target = $region32
    $region31: #{tpu_custom_call.1} parent=5 // pred_region
      %s142 = ssub.s32 %s9, 1
      %p143 = scmp.lt.s32.totalorder %s14, 1
      %s144 = scalar_select %p143, %s14, 1
      %s145 = smul.addr %s144, 30
      %s146 = smul.addr %s145, 4
      %s147 = scalar_lea.vmem %s0, %s146
      %p148 = pneg %p35
      %p149 = pneg %p32
      %p150 = pneg %p56
      %p151 = pneg %p53
      %p152 = pneg %p77
      %p153 = pneg %p74
      %p154 = pneg %p103
      %p155 = pneg %p100
      %p156 = scmp.lt.s32.totalorder %s14, 1
      %s157 = scalar_select %p156, %s14, 1
      %s158 = smul.addr %s157, 16
      %s159 = smul.addr %s158, 8
      %s160 = scalar_lea.vmem %s3, %s159
      %p161 = scmp.lt.s32.totalorder %s14, 1
      %s162 = scalar_select %p161, %s14, 1
      %s163 = smul.addr %s162, 30
      %s164 = smul.addr %s163, 4
      %s165 = scalar_lea.vmem %s0, %s164
      %p166 = scmp.lt.s32.totalorder %s14, 1
      %s167 = scalar_select %p166, %s14, 1
      %s168 = smul.addr %s167, 16
      %s169 = smul.addr %s168, 8
      %s170 = scalar_lea.vmem %s3, %s169
      %v172 = vld [vmem:[%s2] sm:$0x1]
      %v173 = vld [vmem:[%s165] sm:$0xf]
      %v174 = vld [vmem:[%s165 + $0x4] sm:$0xf]
      %v175 = vld [vmem:[%s165 + $0xc] sm:$0xf]
      %v176 = vld [vmem:[%s165 + $0x10] sm:$0xf]
      %v177 = vld [vmem:[%s165 + $0x18] sm:$0xf]
      %v178 = vld [vmem:[%s165 + $0x1c] sm:$0xf]
      %v179 = vld [vmem:[%s165 + $0x24] sm:$0xf]
      %v180 = vld [vmem:[%s165 + $0x28] sm:$0xf]
      %v181 = vld [vmem:[%s165 + $0x30] sm:$0xf]
      %v182 = vld [vmem:[%s165 + $0x34] sm:$0xf]
      %v183 = vld [vmem:[%s165 + $0x3c] sm:$0xf]
      %v184 = vld [vmem:[%s165 + $0x40] sm:$0xf]
      %v185 = vld [vmem:[%s165 + $0x48] sm:$0xf]
      %v186 = vld [vmem:[%s165 + $0x4c] sm:$0xf]
      %v187 = vld [vmem:[%s165 + $0x54] sm:$0xf]
      %v188 = vld [vmem:[%s165 + $0x58] sm:$0xf]
      %v189 = vld [vmem:[%s1] sm:$0xf]
      %v190 = vld [vmem:[%s1 + $0x4] sm:$0xf]
      %v191 = vld [vmem:[%s165 + $0x8] sm:$0x1]
      %v192 = vld [vmem:[%s165 + $0x14] sm:$0x1]
      %v193 = vld [vmem:[%s165 + $0x20] sm:$0x1]
      %v194 = vld [vmem:[%s165 + $0x2c] sm:$0x1]
      %v195 = vld [vmem:[%s165 + $0x38] sm:$0x1]
      %v196 = vld [vmem:[%s165 + $0x44] sm:$0x1]
      %v197 = vld [vmem:[%s165 + $0x50] sm:$0x1]
      %v198 = vld [vmem:[%s165 + $0x5c] sm:$0x1]
      %vm199 = vsmask.f32 3328
      %vm200 = vsmask.f32 7440
      %vm201 = vmor %vm199, %vm200
      %v203 = vshrl.u32 %v173, 16
      %v205 = vrot.slane %v203, 4
      %v206 = vshll.u32 %v173, 16
      %v208 = vrot.slane %v206, 5
      %v209 = vor.u32 %v205, %v208
      %v210 = vrot.slane %v209, 4
      %v212 = vshll.u32 %v174, 16
      %v214 = vrot.slane %v212, 5
      %v215 = vsel %vm201, %v210, %v214
      %v216 = vshrl.u32 %v174, 16
      %v218 = vrot.slane %v216, 4
      %v219 = vor.u32 %v218, %v214
      %v220 = vrot.slane %v219, 4
      %v222 = vshll.u32 %v191, 16
      %v224 = vrot.slane %v222, 5
      %v225 = vsel %vm201, %v220, %v224
      %v227 = vshrl.u32 %v175, 16
      %v229 = vrot.slane %v227, 4
      %v230 = vshll.u32 %v175, 16
      %v232 = vrot.slane %v230, 5
      %v233 = vor.u32 %v229, %v232
      %v234 = vrot.slane %v233, 4
      %v236 = vshll.u32 %v176, 16
      %v238 = vrot.slane %v236, 5
      %v239 = vsel %vm201, %v234, %v238
      %v240 = vshrl.u32 %v176, 16
      %v242 = vrot.slane %v240, 4
      %v243 = vor.u32 %v242, %v238
      %v244 = vrot.slane %v243, 4
      %v246 = vshll.u32 %v192, 16
      %v248 = vrot.slane %v246, 5
      %v249 = vsel %vm201, %v244, %v248
      %v251 = vshrl.u32 %v177, 16
      %v253 = vrot.slane %v251, 4
      %v254 = vshll.u32 %v177, 16
      %v256 = vrot.slane %v254, 5
      %v257 = vor.u32 %v253, %v256
      %v258 = vrot.slane %v257, 4
      %v260 = vshll.u32 %v178, 16
      %v262 = vrot.slane %v260, 5
      %v263 = vsel %vm201, %v258, %v262
      %v264 = vshrl.u32 %v178, 16
      %v266 = vrot.slane %v264, 4
      %v267 = vor.u32 %v266, %v262
      %v268 = vrot.slane %v267, 4
      %v270 = vshll.u32 %v193, 16
      %v272 = vrot.slane %v270, 5
      %v273 = vsel %vm201, %v268, %v272
      %v275 = vshrl.u32 %v179, 16
      %v277 = vrot.slane %v275, 4
      %v278 = vshll.u32 %v179, 16
      %v280 = vrot.slane %v278, 5
      %v281 = vor.u32 %v277, %v280
      %v282 = vrot.slane %v281, 4
      %v284 = vshll.u32 %v180, 16
      %v286 = vrot.slane %v284, 5
      %v287 = vsel %vm201, %v282, %v286
      %v288 = vshrl.u32 %v180, 16
      %v290 = vrot.slane %v288, 4
      %v291 = vor.u32 %v290, %v286
      %v292 = vrot.slane %v291, 4
      %v294 = vshll.u32 %v194, 16
      %v296 = vrot.slane %v294, 5
      %v297 = vsel %vm201, %v292, %v296
      %v299 = vshrl.u32 %v181, 16
      %v301 = vrot.slane %v299, 4
      %v302 = vshll.u32 %v181, 16
      %v304 = vrot.slane %v302, 5
      %v305 = vor.u32 %v301, %v304
      %v306 = vrot.slane %v305, 4
      %v308 = vshll.u32 %v182, 16
      %v310 = vrot.slane %v308, 5
      %v311 = vsel %vm201, %v306, %v310
      %v312 = vshrl.u32 %v182, 16
      %v314 = vrot.slane %v312, 4
      %v315 = vor.u32 %v314, %v310
      %v316 = vrot.slane %v315, 4
      %v318 = vshll.u32 %v195, 16
      %v320 = vrot.slane %v318, 5
      %v321 = vsel %vm201, %v316, %v320
      %v323 = vshrl.u32 %v183, 16
      %v325 = vrot.slane %v323, 4
      %v326 = vshll.u32 %v183, 16
      %v328 = vrot.slane %v326, 5
      %v329 = vor.u32 %v325, %v328
      %v330 = vrot.slane %v329, 4
      %v332 = vshll.u32 %v184, 16
      %v334 = vrot.slane %v332, 5
      %v335 = vsel %vm201, %v330, %v334
      %v336 = vshrl.u32 %v184, 16
      %v338 = vrot.slane %v336, 4
      %v339 = vor.u32 %v338, %v334
      %v340 = vrot.slane %v339, 4
      %v342 = vshll.u32 %v196, 16
      %v344 = vrot.slane %v342, 5
      %v345 = vsel %vm201, %v340, %v344
      %v347 = vshrl.u32 %v185, 16
      %v349 = vrot.slane %v347, 4
      %v350 = vshll.u32 %v185, 16
      %v352 = vrot.slane %v350, 5
      %v353 = vor.u32 %v349, %v352
      %v354 = vrot.slane %v353, 4
      %v356 = vshll.u32 %v186, 16
      %v358 = vrot.slane %v356, 5
      %v359 = vsel %vm201, %v354, %v358
      %v360 = vshrl.u32 %v186, 16
      %v362 = vrot.slane %v360, 4
      %v363 = vor.u32 %v362, %v358
      %v364 = vrot.slane %v363, 4
      %v366 = vshll.u32 %v197, 16
      %v368 = vrot.slane %v366, 5
      %v369 = vsel %vm201, %v364, %v368
      %v371 = vshrl.u32 %v187, 16
      %v373 = vrot.slane %v371, 4
      %v374 = vshll.u32 %v187, 16
      %v376 = vrot.slane %v374, 5
      %v377 = vor.u32 %v373, %v376
      %v378 = vrot.slane %v377, 4
      %v380 = vshll.u32 %v188, 16
      %v382 = vrot.slane %v380, 5
      %v383 = vsel %vm201, %v378, %v382
      %v384 = vshrl.u32 %v188, 16
      %v386 = vrot.slane %v384, 4
      %v387 = vor.u32 %v386, %v382
      %v388 = vrot.slane %v387, 4
      %v390 = vshll.u32 %v198, 16
      %v392 = vrot.slane %v390, 5
      %v393 = vsel %vm201, %v388, %v392
      %s394 = scalar_lea.vmem %s1, 8
      %v395 = vld [vmem:[%s394] sm:$0xf]
      %v396 = vld [vmem:[%s394 + $0x4] sm:$0xf]
      %v397 = vunpack.c.l.b16 %v215
      %v398 = vunpack.c.l.b16 %v225
      %v399 = vunpack.c.l.b16 %v239
      %v400 = vunpack.c.l.b16 %v249
      %v401 = vunpack.c.l.b16 %v263
      %v402 = vunpack.c.l.b16 %v273
      %v403 = vunpack.c.l.b16 %v287
      %v404 = vunpack.c.l.b16 %v297
      %v405 = vunpack.c.l.b16 %v311
      %v406 = vunpack.c.l.b16 %v321
      %v407 = vunpack.c.l.b16 %v335
      %v408 = vunpack.c.l.b16 %v345
      %v409 = vunpack.c.l.b16 %v359
      %v410 = vunpack.c.l.b16 %v369
      %v411 = vunpack.c.l.b16 %v383
      %v412 = vunpack.c.l.b16 %v393
      %v413 = vpack.c.b16 %v398, %v397
      %v414 = vpack.c.b16 %v400, %v399
      %v415 = vpack.c.b16 %v402, %v401
      %v416 = vpack.c.b16 %v404, %v403
      %v417 = vpack.c.b16 %v406, %v405
      %v418 = vpack.c.b16 %v408, %v407
      %v419 = vpack.c.b16 %v410, %v409
      %v420 = vpack.c.b16 %v412, %v411
      %v423 = vunpack.c.l.b16 %v395
      %v424 = vunpack.c.l.b16 %v396
      %v425 = vpack.c.b16 %v424, %v423
      %vm427 = vcmask 130048
      %v429 = vsel %vm427, %v413, 0
      %v432 = vsel %vm427, %v414, 0
      %v435 = vsel %vm427, %v415, 0
      %v438 = vsel %vm427, %v416, 0
      %v441 = vsel %vm427, %v417, 0
      %v444 = vsel %vm427, %v418, 0
      %v447 = vsel %vm427, %v419, 0
      %v450 = vsel %vm427, %v420, 0
      %452 = vmatprep.subr.bf16.mxu0 0
      %453 = vmatpush1.bf16.msra.mxu0 0
      %454 = vmatprep.subr.bf16.mxu0 0
      %455 = vmatpush1.bf16.msra.mxu0 0
      %456 = vmatprep.subr.bf16.mxu0 0
      %457 = vmatpush1.bf16.msra.mxu0 0
      %458 = vmatprep.subr.bf16.mxu0 0
      %459 = vmatpush1.bf16.msra.mxu0 0
      %460 = vmatprep.subr.bf16.mxu0 0
      %461 = vmatpush1.bf16.msra.mxu0 0
      %462 = vmatprep.subr.bf16.mxu0 0
      %463 = vmatpush1.bf16.msra.mxu0 0
      %464 = vmatprep.subr.bf16.mxu0 0
      %465 = vmatpush1.bf16.msra.mxu0 0
      %466 = vmatprep.subr.bf16.mxu0 0
      %467 = vmatpush1.bf16.msra.mxu0 %v425
      %468 = vmatprep.subr.bf16.mxu0 0
      %469 = vmatpush2.bf16.msra.mxu0 0
      %470 = vmatprep.subr.bf16.mxu0 0
      %471 = vmatpush2.bf16.msra.mxu0 0
      %472 = vmatprep.subr.bf16.mxu0 0
      %473 = vmatpush2.bf16.msra.mxu0 0
      %474 = vmatprep.subr.bf16.mxu0 0
      %475 = vmatpush2.bf16.msra.mxu0 0
      %476 = vmatprep.subr.bf16.mxu0 0
      %477 = vmatpush2.bf16.msra.mxu0 0
      %478 = vmatprep.subr.bf16.mxu0 0
      %479 = vmatpush2.bf16.msra.mxu0 0
      %480 = vmatprep.subr.bf16.mxu0 0
      %481 = vmatpush2.bf16.msra.mxu0 0
      %482 = vmatprep.subr.bf16.mxu0 0
      %483 = vmatpush2.bf16.msra.mxu0 0
      %484 = vmatprep.mubr.bf16.mxu0 0
      %485 = vmatmul.mubr.bf16.gmra.mxu0 %v429
      %v486 = vpop.f32.mrf.mxu0
      %v487 = vadd.f32 0.0, %v486
      %v488 = vpop.f32.mrf.mxu0
      %v489 = vpop.f32.mrf.mxu0
      %v490 = vadd.f32 0.0, %v489
      %v491 = vpop.f32.mrf.mxu0
      %492 = vmatprep.mubr.bf16.mxu0 0
      %493 = vmatmul.mubr.bf16.gmra.mxu0 %v432
      %v494 = vpop.f32.mrf.mxu0
      %v495 = vadd.f32 0.0, %v494
      %v496 = vpop.f32.mrf.mxu0
      %v497 = vpop.f32.mrf.mxu0
      %v498 = vadd.f32 0.0, %v497
      %v499 = vpop.f32.mrf.mxu0
      %500 = vmatprep.mubr.bf16.mxu0 0
      %501 = vmatmul.mubr.bf16.gmra.mxu0 %v435
      %v502 = vpop.f32.mrf.mxu0
      %v503 = vadd.f32 0.0, %v502
      %v504 = vpop.f32.mrf.mxu0
      %v505 = vpop.f32.mrf.mxu0
      %v506 = vadd.f32 0.0, %v505
      %v507 = vpop.f32.mrf.mxu0
      %508 = vmatprep.mubr.bf16.mxu0 0
      %509 = vmatmul.mubr.bf16.gmra.mxu0 %v438
      %v510 = vpop.f32.mrf.mxu0
      %v511 = vadd.f32 0.0, %v510
      %v512 = vpop.f32.mrf.mxu0
      %v513 = vpop.f32.mrf.mxu0
      %v514 = vadd.f32 0.0, %v513
      %v515 = vpop.f32.mrf.mxu0
      %516 = vmatprep.mubr.bf16.mxu0 0
      %517 = vmatmul.mubr.bf16.gmra.mxu0 %v441
      %v518 = vpop.f32.mrf.mxu0
      %v519 = vadd.f32 0.0, %v518
      %v520 = vpop.f32.mrf.mxu0
      %v521 = vpop.f32.mrf.mxu0
      %v522 = vadd.f32 0.0, %v521
      %v523 = vpop.f32.mrf.mxu0
      %524 = vmatprep.mubr.bf16.mxu0 0
      %525 = vmatmul.mubr.bf16.gmra.mxu0 %v444
      %v526 = vpop.f32.mrf.mxu0
      %v527 = vadd.f32 0.0, %v526
      %v528 = vpop.f32.mrf.mxu0
      %v529 = vpop.f32.mrf.mxu0
      %v530 = vadd.f32 0.0, %v529
      %v531 = vpop.f32.mrf.mxu0
      %532 = vmatprep.mubr.bf16.mxu0 0
      %533 = vmatmul.mubr.bf16.gmra.mxu0 %v447
      %v534 = vpop.f32.mrf.mxu0
      %v535 = vadd.f32 0.0, %v534
      %v536 = vpop.f32.mrf.mxu0
      %v537 = vpop.f32.mrf.mxu0
      %v538 = vadd.f32 0.0, %v537
      %v539 = vpop.f32.mrf.mxu0
      %540 = vmatprep.mubr.bf16.mxu0 0
      %541 = vmatmul.mubr.bf16.gmra.mxu0 %v450
      %v542 = vpop.f32.mrf.mxu0
      %v543 = vadd.f32 0.0, %v542
      %v544 = vpop.f32.mrf.mxu0
      %v545 = vpop.f32.mrf.mxu0
      %v546 = vadd.f32 0.0, %v545
      %v547 = vpop.f32.mrf.mxu0
      %548 = vdwg.mxu0
      %v565 = vunpack.c.l.b16 %v173
      %v566 = vunpack.c.l.b16 %v174
      %v567 = vunpack.c.l.b16 %v175
      %v568 = vunpack.c.l.b16 %v176
      %v569 = vunpack.c.l.b16 %v177
      %v570 = vunpack.c.l.b16 %v178
      %v571 = vunpack.c.l.b16 %v179
      %v572 = vunpack.c.l.b16 %v180
      %v573 = vunpack.c.l.b16 %v181
      %v574 = vunpack.c.l.b16 %v182
      %v575 = vunpack.c.l.b16 %v183
      %v576 = vunpack.c.l.b16 %v184
      %v577 = vunpack.c.l.b16 %v185
      %v578 = vunpack.c.l.b16 %v186
      %v579 = vunpack.c.l.b16 %v187
      %v580 = vunpack.c.l.b16 %v188
      %v581 = vpack.c.b16 %v566, %v565
      %v582 = vpack.c.b16 %v568, %v567
      %v583 = vpack.c.b16 %v570, %v569
      %v584 = vpack.c.b16 %v572, %v571
      %v585 = vpack.c.b16 %v574, %v573
      %v586 = vpack.c.b16 %v576, %v575
      %v587 = vpack.c.b16 %v578, %v577
      %v588 = vpack.c.b16 %v580, %v579
      %v591 = vunpack.c.l.b16 %v189
      %v592 = vunpack.c.l.b16 %v190
      %v593 = vpack.c.b16 %v592, %v591
      %v596 = vsel %vm427, %v581, 0
      %v599 = vsel %vm427, %v582, 0
      %v602 = vsel %vm427, %v583, 0
      %v605 = vsel %vm427, %v584, 0
      %v608 = vsel %vm427, %v585, 0
      %v611 = vsel %vm427, %v586, 0
      %v614 = vsel %vm427, %v587, 0
      %v617 = vsel %vm427, %v588, 0
      %619 = vmatprep.subr.bf16.mxu0 0
      %620 = vmatpush1.bf16.msra.mxu0 0
      %621 = vmatprep.subr.bf16.mxu0 0
      %622 = vmatpush1.bf16.msra.mxu0 0
      %623 = vmatprep.subr.bf16.mxu0 0
      %624 = vmatpush1.bf16.msra.mxu0 0
      %625 = vmatprep.subr.bf16.mxu0 0
      %626 = vmatpush1.bf16.msra.mxu0 0
      %627 = vmatprep.subr.bf16.mxu0 0
      %628 = vmatpush1.bf16.msra.mxu0 0
      %629 = vmatprep.subr.bf16.mxu0 0
      %630 = vmatpush1.bf16.msra.mxu0 0
      %631 = vmatprep.subr.bf16.mxu0 0
      %632 = vmatpush1.bf16.msra.mxu0 0
      %633 = vmatprep.subr.bf16.mxu0 0
      %634 = vmatpush1.bf16.msra.mxu0 %v593
      %635 = vmatprep.subr.bf16.mxu0 0
      %636 = vmatpush2.bf16.msra.mxu0 0
      %637 = vmatprep.subr.bf16.mxu0 0
      %638 = vmatpush2.bf16.msra.mxu0 0
      %639 = vmatprep.subr.bf16.mxu0 0
      %640 = vmatpush2.bf16.msra.mxu0 0
      %641 = vmatprep.subr.bf16.mxu0 0
      %642 = vmatpush2.bf16.msra.mxu0 0
      %643 = vmatprep.subr.bf16.mxu0 0
      %644 = vmatpush2.bf16.msra.mxu0 0
      %645 = vmatprep.subr.bf16.mxu0 0
      %646 = vmatpush2.bf16.msra.mxu0 0
      %647 = vmatprep.subr.bf16.mxu0 0
      %648 = vmatpush2.bf16.msra.mxu0 0
      %649 = vmatprep.subr.bf16.mxu0 0
      %650 = vmatpush2.bf16.msra.mxu0 0
      %651 = vmatprep.mubr.bf16.mxu0 0
      %652 = vmatmul.mubr.bf16.gmra.mxu0 %v596
      %v653 = vpop.f32.mrf.mxu0
      %v654 = vadd.f32 %v487, %v653
      %v655 = vpop.f32.mrf.mxu0
      %v656 = vpop.f32.mrf.mxu0
      %v657 = vadd.f32 %v490, %v656
      %v658 = vpop.f32.mrf.mxu0
      %659 = vmatprep.mubr.bf16.mxu0 0
      %660 = vmatmul.mubr.bf16.gmra.mxu0 %v599
      %v661 = vpop.f32.mrf.mxu0
      %v662 = vadd.f32 %v495, %v661
      %v663 = vpop.f32.mrf.mxu0
      %v664 = vpop.f32.mrf.mxu0
      %v665 = vadd.f32 %v498, %v664
      %v666 = vpop.f32.mrf.mxu0
      %667 = vmatprep.mubr.bf16.mxu0 0
      %668 = vmatmul.mubr.bf16.gmra.mxu0 %v602
      %v669 = vpop.f32.mrf.mxu0
      %v670 = vadd.f32 %v503, %v669
      %v671 = vpop.f32.mrf.mxu0
      %v672 = vpop.f32.mrf.mxu0
      %v673 = vadd.f32 %v506, %v672
      %v674 = vpop.f32.mrf.mxu0
      %675 = vmatprep.mubr.bf16.mxu0 0
      %676 = vmatmul.mubr.bf16.gmra.mxu0 %v605
      %v677 = vpop.f32.mrf.mxu0
      %v678 = vadd.f32 %v511, %v677
      %v679 = vpop.f32.mrf.mxu0
      %v680 = vpop.f32.mrf.mxu0
      %v681 = vadd.f32 %v514, %v680
      %v682 = vpop.f32.mrf.mxu0
      %683 = vmatprep.mubr.bf16.mxu0 0
      %684 = vmatmul.mubr.bf16.gmra.mxu0 %v608
      %v685 = vpop.f32.mrf.mxu0
      %v686 = vadd.f32 %v519, %v685
      %v687 = vpop.f32.mrf.mxu0
      %v688 = vpop.f32.mrf.mxu0
      %v689 = vadd.f32 %v522, %v688
      %v690 = vpop.f32.mrf.mxu0
      %691 = vmatprep.mubr.bf16.mxu0 0
      %692 = vmatmul.mubr.bf16.gmra.mxu0 %v611
      %v693 = vpop.f32.mrf.mxu0
      %v694 = vadd.f32 %v527, %v693
      %v695 = vpop.f32.mrf.mxu0
      %v696 = vpop.f32.mrf.mxu0
      %v697 = vadd.f32 %v530, %v696
      %v698 = vpop.f32.mrf.mxu0
      %699 = vmatprep.mubr.bf16.mxu0 0
      %700 = vmatmul.mubr.bf16.gmra.mxu0 %v614
      %v701 = vpop.f32.mrf.mxu0
      %v702 = vadd.f32 %v535, %v701
      %v703 = vpop.f32.mrf.mxu0
      %v704 = vpop.f32.mrf.mxu0
      %v705 = vadd.f32 %v538, %v704
      %v706 = vpop.f32.mrf.mxu0
      %707 = vmatprep.mubr.bf16.mxu0 0
      %708 = vmatmul.mubr.bf16.gmra.mxu0 %v617
      %v709 = vpop.f32.mrf.mxu0
      %v710 = vadd.f32 %v543, %v709
      %v711 = vpop.f32.mrf.mxu0
      %v712 = vpop.f32.mrf.mxu0
      %v713 = vadd.f32 %v546, %v712
      %v714 = vpop.f32.mrf.mxu0
      %715 = vdwg.mxu0
      %v716 = vld [vmem:[%s165] sm:$0xe]
      %v717 = vld [vmem:[%s165 + $0xc] sm:$0xe]
      %v718 = vld [vmem:[%s165 + $0x18] sm:$0xe]
      %v719 = vld [vmem:[%s165 + $0x24] sm:$0xe]
      %v720 = vld [vmem:[%s165 + $0x30] sm:$0xe]
      %v721 = vld [vmem:[%s165 + $0x3c] sm:$0xe]
      %v722 = vld [vmem:[%s165 + $0x48] sm:$0xe]
      %v723 = vld [vmem:[%s165 + $0x54] sm:$0xe]
      %vm740 = vcmask 1042432
      %vm741 = vcmask 1046532
      %vm742 = vmor %vm740, %vm741
      %v743 = vrot.slane %v716, 5
      %v744 = vrot.slane %v743, 4
      %v745 = vrot.slane %v174, 5
      %v746 = vsel %vm742, %v744, %v745
      %v747 = vrot.slane %v745, 4
      %v748 = vrot.slane %v191, 5
      %v749 = vsel %vm742, %v747, %v748
      %v750 = vrot.slane %v717, 5
      %v751 = vrot.slane %v750, 4
      %v752 = vrot.slane %v176, 5
      %v753 = vsel %vm742, %v751, %v752
      %v754 = vrot.slane %v752, 4
      %v755 = vrot.slane %v192, 5
      %v756 = vsel %vm742, %v754, %v755
      %v757 = vrot.slane %v718, 5
      %v758 = vrot.slane %v757, 4
      %v759 = vrot.slane %v178, 5
      %v760 = vsel %vm742, %v758, %v759
      %v761 = vrot.slane %v759, 4
      %v762 = vrot.slane %v193, 5
      %v763 = vsel %vm742, %v761, %v762
      %v764 = vrot.slane %v719, 5
      %v765 = vrot.slane %v764, 4
      %v766 = vrot.slane %v180, 5
      %v767 = vsel %vm742, %v765, %v766
      %v768 = vrot.slane %v766, 4
      %v769 = vrot.slane %v194, 5
      %v770 = vsel %vm742, %v768, %v769
      %v771 = vrot.slane %v720, 5
      %v772 = vrot.slane %v771, 4
      %v773 = vrot.slane %v182, 5
      %v774 = vsel %vm742, %v772, %v773
      %v775 = vrot.slane %v773, 4
      %v776 = vrot.slane %v195, 5
      %v777 = vsel %vm742, %v775, %v776
      %v778 = vrot.slane %v721, 5
      %v779 = vrot.slane %v778, 4
      %v780 = vrot.slane %v184, 5
      %v781 = vsel %vm742, %v779, %v780
      %v782 = vrot.slane %v780, 4
      %v783 = vrot.slane %v196, 5
      %v784 = vsel %vm742, %v782, %v783
      %v785 = vrot.slane %v722, 5
      %v786 = vrot.slane %v785, 4
      %v787 = vrot.slane %v186, 5
      %v788 = vsel %vm742, %v786, %v787
      %v789 = vrot.slane %v787, 4
      %v790 = vrot.slane %v197, 5
      %v791 = vsel %vm742, %v789, %v790
      %v792 = vrot.slane %v723, 5
      %v793 = vrot.slane %v792, 4
      %v794 = vrot.slane %v188, 5
      %v795 = vsel %vm742, %v793, %v794
      %v796 = vrot.slane %v794, 4
      %v797 = vrot.slane %v198, 5
      %v798 = vsel %vm742, %v796, %v797
      %s799 = scalar_lea.vmem %s1, 16
      %v800 = vld [vmem:[%s799] sm:$0xf]
      %v801 = vld [vmem:[%s799 + $0x4] sm:$0xf]
      %v802 = vunpack.c.l.b16 %v746
      %v803 = vunpack.c.l.b16 %v749
      %v804 = vunpack.c.l.b16 %v753
      %v805 = vunpack.c.l.b16 %v756
      %v806 = vunpack.c.l.b16 %v760
      %v807 = vunpack.c.l.b16 %v763
      %v808 = vunpack.c.l.b16 %v767
      %v809 = vunpack.c.l.b16 %v770
      %v810 = vunpack.c.l.b16 %v774
      %v811 = vunpack.c.l.b16 %v777
      %v812 = vunpack.c.l.b16 %v781
      %v813 = vunpack.c.l.b16 %v784
      %v814 = vunpack.c.l.b16 %v788
      %v815 = vunpack.c.l.b16 %v791
      %v816 = vunpack.c.l.b16 %v795
      %v817 = vunpack.c.l.b16 %v798
      %v818 = vpack.c.b16 %v803, %v802
      %v819 = vpack.c.b16 %v805, %v804
      %v820 = vpack.c.b16 %v807, %v806
      %v821 = vpack.c.b16 %v809, %v808
      %v822 = vpack.c.b16 %v811, %v810
      %v823 = vpack.c.b16 %v813, %v812
      %v824 = vpack.c.b16 %v815, %v814
      %v825 = vpack.c.b16 %v817, %v816
      %v828 = vunpack.c.l.b16 %v800
      %v829 = vunpack.c.l.b16 %v801
      %v830 = vpack.c.b16 %v829, %v828
      %v833 = vsel %vm427, %v818, 0
      %v836 = vsel %vm427, %v819, 0
      %v839 = vsel %vm427, %v820, 0
      %v842 = vsel %vm427, %v821, 0
      %v845 = vsel %vm427, %v822, 0
      %v848 = vsel %vm427, %v823, 0
      %v851 = vsel %vm427, %v824, 0
      %v854 = vsel %vm427, %v825, 0
      %856 = vmatprep.subr.bf16.mxu0 0
      %857 = vmatpush1.bf16.msra.mxu0 0
      %858 = vmatprep.subr.bf16.mxu0 0
      %859 = vmatpush1.bf16.msra.mxu0 0
      %860 = vmatprep.subr.bf16.mxu0 0
      %861 = vmatpush1.bf16.msra.mxu0 0
      %862 = vmatprep.subr.bf16.mxu0 0
      %863 = vmatpush1.bf16.msra.mxu0 0
      %864 = vmatprep.subr.bf16.mxu0 0
      %865 = vmatpush1.bf16.msra.mxu0 0
      %866 = vmatprep.subr.bf16.mxu0 0
      %867 = vmatpush1.bf16.msra.mxu0 0
      %868 = vmatprep.subr.bf16.mxu0 0
      %869 = vmatpush1.bf16.msra.mxu0 0
      %870 = vmatprep.subr.bf16.mxu0 0
      %871 = vmatpush1.bf16.msra.mxu0 %v830
      %872 = vmatprep.subr.bf16.mxu0 0
      %873 = vmatpush2.bf16.msra.mxu0 0
      %874 = vmatprep.subr.bf16.mxu0 0
      %875 = vmatpush2.bf16.msra.mxu0 0
      %876 = vmatprep.subr.bf16.mxu0 0
      %877 = vmatpush2.bf16.msra.mxu0 0
      %878 = vmatprep.subr.bf16.mxu0 0
      %879 = vmatpush2.bf16.msra.mxu0 0
      %880 = vmatprep.subr.bf16.mxu0 0
      %881 = vmatpush2.bf16.msra.mxu0 0
      %882 = vmatprep.subr.bf16.mxu0 0
      %883 = vmatpush2.bf16.msra.mxu0 0
      %884 = vmatprep.subr.bf16.mxu0 0
      %885 = vmatpush2.bf16.msra.mxu0 0
      %886 = vmatprep.subr.bf16.mxu0 0
      %887 = vmatpush2.bf16.msra.mxu0 0
      %888 = vmatprep.mubr.bf16.mxu0 0
      %889 = vmatmul.mubr.bf16.gmra.mxu0 %v833
      %v890 = vpop.f32.mrf.mxu0
      %v891 = vadd.f32 0.0, %v890
      %v892 = vpop.f32.mrf.mxu0
      %v893 = vpop.f32.mrf.mxu0
      %v894 = vadd.f32 0.0, %v893
      %v895 = vpop.f32.mrf.mxu0
      %896 = vmatprep.mubr.bf16.mxu0 0
      %897 = vmatmul.mubr.bf16.gmra.mxu0 %v836
      %v898 = vpop.f32.mrf.mxu0
      %v899 = vadd.f32 0.0, %v898
      %v900 = vpop.f32.mrf.mxu0
      %v901 = vpop.f32.mrf.mxu0
      %v902 = vadd.f32 0.0, %v901
      %v903 = vpop.f32.mrf.mxu0
      %904 = vmatprep.mubr.bf16.mxu0 0
      %905 = vmatmul.mubr.bf16.gmra.mxu0 %v839
      %v906 = vpop.f32.mrf.mxu0
      %v907 = vadd.f32 0.0, %v906
      %v908 = vpop.f32.mrf.mxu0
      %v909 = vpop.f32.mrf.mxu0
      %v910 = vadd.f32 0.0, %v909
      %v911 = vpop.f32.mrf.mxu0
      %912 = vmatprep.mubr.bf16.mxu0 0
      %913 = vmatmul.mubr.bf16.gmra.mxu0 %v842
      %v914 = vpop.f32.mrf.mxu0
      %v915 = vadd.f32 0.0, %v914
      %v916 = vpop.f32.mrf.mxu0
      %v917 = vpop.f32.mrf.mxu0
      %v918 = vadd.f32 0.0, %v917
      %v919 = vpop.f32.mrf.mxu0
      %920 = vmatprep.mubr.bf16.mxu0 0
      %921 = vmatmul.mubr.bf16.gmra.mxu0 %v845
      %v922 = vpop.f32.mrf.mxu0
      %v923 = vadd.f32 0.0, %v922
      %v924 = vpop.f32.mrf.mxu0
      %v925 = vpop.f32.mrf.mxu0
      %v926 = vadd.f32 0.0, %v925
      %v927 = vpop.f32.mrf.mxu0
      %928 = vmatprep.mubr.bf16.mxu0 0
      %929 = vmatmul.mubr.bf16.gmra.mxu0 %v848
      %v930 = vpop.f32.mrf.mxu0
      %v931 = vadd.f32 0.0, %v930
      %v932 = vpop.f32.mrf.mxu0
      %v933 = vpop.f32.mrf.mxu0
      %v934 = vadd.f32 0.0, %v933
      %v935 = vpop.f32.mrf.mxu0
      %936 = vmatprep.mubr.bf16.mxu0 0
      %937 = vmatmul.mubr.bf16.gmra.mxu0 %v851
      %v938 = vpop.f32.mrf.mxu0
      %v939 = vadd.f32 0.0, %v938
      %v940 = vpop.f32.mrf.mxu0
      %v941 = vpop.f32.mrf.mxu0
      %v942 = vadd.f32 0.0, %v941
      %v943 = vpop.f32.mrf.mxu0
      %944 = vmatprep.mubr.bf16.mxu0 0
      %945 = vmatmul.mubr.bf16.gmra.mxu0 %v854
      %v946 = vpop.f32.mrf.mxu0
      %v947 = vadd.f32 0.0, %v946
      %v948 = vpop.f32.mrf.mxu0
      %v949 = vpop.f32.mrf.mxu0
      %v950 = vadd.f32 0.0, %v949
      %v951 = vpop.f32.mrf.mxu0
      %952 = vdwg.mxu0
      %v953 = vadd.f32 %v654, %v891
      %v954 = vadd.f32 %v657, %v894
      %v955 = vadd.f32 %v662, %v899
      %v956 = vadd.f32 %v665, %v902
      %v957 = vadd.f32 %v670, %v907
      %v958 = vadd.f32 %v673, %v910
      %v959 = vadd.f32 %v678, %v915
      %v960 = vadd.f32 %v681, %v918
      %v961 = vadd.f32 %v686, %v923
      %v962 = vadd.f32 %v689, %v926
      %v963 = vadd.f32 %v694, %v931
      %v964 = vadd.f32 %v697, %v934
      %v965 = vadd.f32 %v702, %v939
      %v966 = vadd.f32 %v705, %v942
      %v967 = vadd.f32 %v710, %v947
      %v968 = vadd.f32 %v713, %v950
      %s969 = scalar_lea.vmem %s165, 12
      %v970 = vld [vmem:[%s969] sm:$0xf]
      %v971 = vld [vmem:[%s969 + $0x4] sm:$0xf]
      %v972 = vld [vmem:[%s969 + $0xc] sm:$0xf]
      %v973 = vld [vmem:[%s969 + $0x10] sm:$0xf]
      %v974 = vld [vmem:[%s969 + $0x18] sm:$0xf]
      %v975 = vld [vmem:[%s969 + $0x1c] sm:$0xf]
      %v976 = vld [vmem:[%s969 + $0x24] sm:$0xf]
      %v977 = vld [vmem:[%s969 + $0x28] sm:$0xf]
      %v978 = vld [vmem:[%s969 + $0x30] sm:$0xf]
      %v979 = vld [vmem:[%s969 + $0x34] sm:$0xf]
      %v980 = vld [vmem:[%s969 + $0x3c] sm:$0xf]
      %v981 = vld [vmem:[%s969 + $0x40] sm:$0xf]
      %v982 = vld [vmem:[%s969 + $0x48] sm:$0xf]
      %v983 = vld [vmem:[%s969 + $0x4c] sm:$0xf]
      %v984 = vld [vmem:[%s969 + $0x54] sm:$0xf]
      %v985 = vld [vmem:[%s969 + $0x58] sm:$0xf]
      %s986 = scalar_lea.vmem %s1, 24
      %v987 = vld [vmem:[%s986] sm:$0xf]
      %v988 = vld [vmem:[%s986 + $0x4] sm:$0xf]
      %v1005 = vunpack.c.l.b16 %v970
      %v1006 = vunpack.c.l.b16 %v971
      %v1007 = vunpack.c.l.b16 %v972
      %v1008 = vunpack.c.l.b16 %v973
      %v1009 = vunpack.c.l.b16 %v974
      %v1010 = vunpack.c.l.b16 %v975
      %v1011 = vunpack.c.l.b16 %v976
      %v1012 = vunpack.c.l.b16 %v977
      %v1013 = vunpack.c.l.b16 %v978
      %v1014 = vunpack.c.l.b16 %v979
      %v1015 = vunpack.c.l.b16 %v980
      %v1016 = vunpack.c.l.b16 %v981
      %v1017 = vunpack.c.l.b16 %v982
      %v1018 = vunpack.c.l.b16 %v983
      %v1019 = vunpack.c.l.b16 %v984
      %v1020 = vunpack.c.l.b16 %v985
      %v1021 = vpack.c.b16 %v1006, %v1005
      %v1022 = vpack.c.b16 %v1008, %v1007
      %v1023 = vpack.c.b16 %v1010, %v1009
      %v1024 = vpack.c.b16 %v1012, %v1011
      %v1025 = vpack.c.b16 %v1014, %v1013
      %v1026 = vpack.c.b16 %v1016, %v1015
      %v1027 = vpack.c.b16 %v1018, %v1017
      %v1028 = vpack.c.b16 %v1020, %v1019
      %v1031 = vunpack.c.l.b16 %v987
      %v1032 = vunpack.c.l.b16 %v988
      %v1033 = vpack.c.b16 %v1032, %v1031
      %v1036 = vsel %vm427, %v1021, 0
      %v1039 = vsel %vm427, %v1022, 0
      %v1042 = vsel %vm427, %v1023, 0
      %v1045 = vsel %vm427, %v1024, 0
      %v1048 = vsel %vm427, %v1025, 0
      %v1051 = vsel %vm427, %v1026, 0
      %v1054 = vsel %vm427, %v1027, 0
      %v1057 = vsel %vm427, %v1028, 0
      %1059 = vmatprep.subr.bf16.mxu0 0
      %1060 = vmatpush1.bf16.msra.mxu0 0
      %1061 = vmatprep.subr.bf16.mxu0 0
      %1062 = vmatpush1.bf16.msra.mxu0 0
      %1063 = vmatprep.subr.bf16.mxu0 0
      %1064 = vmatpush1.bf16.msra.mxu0 0
      %1065 = vmatprep.subr.bf16.mxu0 0
      %1066 = vmatpush1.bf16.msra.mxu0 0
      %1067 = vmatprep.subr.bf16.mxu0 0
      %1068 = vmatpush1.bf16.msra.mxu0 0
      %1069 = vmatprep.subr.bf16.mxu0 0
      %1070 = vmatpush1.bf16.msra.mxu0 0
      %1071 = vmatprep.subr.bf16.mxu0 0
      %1072 = vmatpush1.bf16.msra.mxu0 0
      %1073 = vmatprep.subr.bf16.mxu0 0
      %1074 = vmatpush1.bf16.msra.mxu0 %v1033
      %1075 = vmatprep.subr.bf16.mxu0 0
      %1076 = vmatpush2.bf16.msra.mxu0 0
      %1077 = vmatprep.subr.bf16.mxu0 0
      %1078 = vmatpush2.bf16.msra.mxu0 0
      %1079 = vmatprep.subr.bf16.mxu0 0
      %1080 = vmatpush2.bf16.msra.mxu0 0
      %1081 = vmatprep.subr.bf16.mxu0 0
      %1082 = vmatpush2.bf16.msra.mxu0 0
      %1083 = vmatprep.subr.bf16.mxu0 0
      %1084 = vmatpush2.bf16.msra.mxu0 0
      %1085 = vmatprep.subr.bf16.mxu0 0
      %1086 = vmatpush2.bf16.msra.mxu0 0
      %1087 = vmatprep.subr.bf16.mxu0 0
      %1088 = vmatpush2.bf16.msra.mxu0 0
      %1089 = vmatprep.subr.bf16.mxu0 0
      %1090 = vmatpush2.bf16.msra.mxu0 0
      %1091 = vmatprep.mubr.bf16.mxu0 0
      %1092 = vmatmul.mubr.bf16.gmra.mxu0 %v1036
      %v1093 = vpop.f32.mrf.mxu0
      %v1094 = vadd.f32 0.0, %v1093
      %v1095 = vpop.f32.mrf.mxu0
      %v1096 = vpop.f32.mrf.mxu0
      %v1097 = vadd.f32 0.0, %v1096
      %v1098 = vpop.f32.mrf.mxu0
      %1099 = vmatprep.mubr.bf16.mxu0 0
      %1100 = vmatmul.mubr.bf16.gmra.mxu0 %v1039
      %v1101 = vpop.f32.mrf.mxu0
      %v1102 = vadd.f32 0.0, %v1101
      %v1103 = vpop.f32.mrf.mxu0
      %v1104 = vpop.f32.mrf.mxu0
      %v1105 = vadd.f32 0.0, %v1104
      %v1106 = vpop.f32.mrf.mxu0
      %1107 = vmatprep.mubr.bf16.mxu0 0
      %1108 = vmatmul.mubr.bf16.gmra.mxu0 %v1042
      %v1109 = vpop.f32.mrf.mxu0
      %v1110 = vadd.f32 0.0, %v1109
      %v1111 = vpop.f32.mrf.mxu0
      %v1112 = vpop.f32.mrf.mxu0
      %v1113 = vadd.f32 0.0, %v1112
      %v1114 = vpop.f32.mrf.mxu0
      %1115 = vmatprep.mubr.bf16.mxu0 0
      %1116 = vmatmul.mubr.bf16.gmra.mxu0 %v1045
      %v1117 = vpop.f32.mrf.mxu0
      %v1118 = vadd.f32 0.0, %v1117
      %v1119 = vpop.f32.mrf.mxu0
      %v1120 = vpop.f32.mrf.mxu0
      %v1121 = vadd.f32 0.0, %v1120
      %v1122 = vpop.f32.mrf.mxu0
      %1123 = vmatprep.mubr.bf16.mxu0 0
      %1124 = vmatmul.mubr.bf16.gmra.mxu0 %v1048
      %v1125 = vpop.f32.mrf.mxu0
      %v1126 = vadd.f32 0.0, %v1125
      %v1127 = vpop.f32.mrf.mxu0
      %v1128 = vpop.f32.mrf.mxu0
      %v1129 = vadd.f32 0.0, %v1128
      %v1130 = vpop.f32.mrf.mxu0
      %1131 = vmatprep.mubr.bf16.mxu0 0
      %1132 = vmatmul.mubr.bf16.gmra.mxu0 %v1051
      %v1133 = vpop.f32.mrf.mxu0
      %v1134 = vadd.f32 0.0, %v1133
      %v1135 = vpop.f32.mrf.mxu0
      %v1136 = vpop.f32.mrf.mxu0
      %v1137 = vadd.f32 0.0, %v1136
      %v1138 = vpop.f32.mrf.mxu0
      %1139 = vmatprep.mubr.bf16.mxu0 0
      %1140 = vmatmul.mubr.bf16.gmra.mxu0 %v1054
      %v1141 = vpop.f32.mrf.mxu0
      %v1142 = vadd.f32 0.0, %v1141
      %v1143 = vpop.f32.mrf.mxu0
      %v1144 = vpop.f32.mrf.mxu0
      %v1145 = vadd.f32 0.0, %v1144
      %v1146 = vpop.f32.mrf.mxu0
      %1147 = vmatprep.mubr.bf16.mxu0 0
      %1148 = vmatmul.mubr.bf16.gmra.mxu0 %v1057
      %v1149 = vpop.f32.mrf.mxu0
      %v1150 = vadd.f32 0.0, %v1149
      %v1151 = vpop.f32.mrf.mxu0
      %v1152 = vpop.f32.mrf.mxu0
      %v1153 = vadd.f32 0.0, %v1152
      %v1154 = vpop.f32.mrf.mxu0
      %1155 = vdwg.mxu0
      %v1156 = vadd.f32 %v953, %v1094
      %v1157 = vadd.f32 %v954, %v1097
      %v1158 = vadd.f32 %v955, %v1102
      %v1159 = vadd.f32 %v956, %v1105
      %v1160 = vadd.f32 %v957, %v1110
      %v1161 = vadd.f32 %v958, %v1113
      %v1162 = vadd.f32 %v959, %v1118
      %v1163 = vadd.f32 %v960, %v1121
      %v1164 = vadd.f32 %v961, %v1126
      %v1165 = vadd.f32 %v962, %v1129
      %v1166 = vadd.f32 %v963, %v1134
      %v1167 = vadd.f32 %v964, %v1137
      %v1168 = vadd.f32 %v965, %v1142
      %v1169 = vadd.f32 %v966, %v1145
      %v1170 = vadd.f32 %v967, %v1150
      %v1171 = vadd.f32 %v968, %v1153
      %v1172 = vld [vmem:[%s969] sm:$0xf]
      %v1173 = vld [vmem:[%s969 + $0x4] sm:$0xf]
      %v1174 = vld [vmem:[%s969 + $0x8] sm:$0x1]
      %v1175 = vld [vmem:[%s969 + $0xc] sm:$0xf]
      %v1176 = vld [vmem:[%s969 + $0x10] sm:$0xf]
      %v1177 = vld [vmem:[%s969 + $0x14] sm:$0x1]
      %v1178 = vld [vmem:[%s969 + $0x18] sm:$0xf]
      %v1179 = vld [vmem:[%s969 + $0x1c] sm:$0xf]
      %v1180 = vld [vmem:[%s969 + $0x20] sm:$0x1]
      %v1181 = vld [vmem:[%s969 + $0x24] sm:$0xf]
      %v1182 = vld [vmem:[%s969 + $0x28] sm:$0xf]
      %v1183 = vld [vmem:[%s969 + $0x2c] sm:$0x1]
      %v1184 = vld [vmem:[%s969 + $0x30] sm:$0xf]
      %v1185 = vld [vmem:[%s969 + $0x34] sm:$0xf]
      %v1186 = vld [vmem:[%s969 + $0x38] sm:$0x1]
      %v1187 = vld [vmem:[%s969 + $0x3c] sm:$0xf]
      %v1188 = vld [vmem:[%s969 + $0x40] sm:$0xf]
      %v1189 = vld [vmem:[%s969 + $0x44] sm:$0x1]
      %v1190 = vld [vmem:[%s969 + $0x48] sm:$0xf]
      %v1191 = vld [vmem:[%s969 + $0x4c] sm:$0xf]
      %v1192 = vld [vmem:[%s969 + $0x50] sm:$0x1]
      %v1193 = vld [vmem:[%s969 + $0x54] sm:$0xf]
      %v1194 = vld [vmem:[%s969 + $0x58] sm:$0xf]
      %v1195 = vld [vmem:[%s969 + $0x5c] sm:$0x1]
      %v1197 = vshrl.u32 %v1172, 16
      %v1199 = vrot.slane %v1197, 4
      %v1200 = vshll.u32 %v1172, 16
      %v1202 = vrot.slane %v1200, 5
      %v1203 = vor.u32 %v1199, %v1202
      %v1204 = vrot.slane %v1203, 4
      %v1206 = vshll.u32 %v1173, 16
      %v1208 = vrot.slane %v1206, 5
      %v1209 = vsel %vm201, %v1204, %v1208
      %v1210 = vshrl.u32 %v1173, 16
      %v1212 = vrot.slane %v1210, 4
      %v1213 = vor.u32 %v1212, %v1208
      %v1214 = vrot.slane %v1213, 4
      %v1216 = vshll.u32 %v1174, 16
      %v1218 = vrot.slane %v1216, 5
      %v1219 = vsel %vm201, %v1214, %v1218
      %v1221 = vshrl.u32 %v1175, 16
      %v1223 = vrot.slane %v1221, 4
      %v1224 = vshll.u32 %v1175, 16
      %v1226 = vrot.slane %v1224, 5
      %v1227 = vor.u32 %v1223, %v1226
      %v1228 = vrot.slane %v1227, 4
      %v1230 = vshll.u32 %v1176, 16
      %v1232 = vrot.slane %v1230, 5
      %v1233 = vsel %vm201, %v1228, %v1232
      %v1234 = vshrl.u32 %v1176, 16
      %v1236 = vrot.slane %v1234, 4
      %v1237 = vor.u32 %v1236, %v1232
      %v1238 = vrot.slane %v1237, 4
      %v1240 = vshll.u32 %v1177, 16
      %v1242 = vrot.slane %v1240, 5
      %v1243 = vsel %vm201, %v1238, %v1242
      %v1245 = vshrl.u32 %v1178, 16
      %v1247 = vrot.slane %v1245, 4
      %v1248 = vshll.u32 %v1178, 16
      %v1250 = vrot.slane %v1248, 5
      %v1251 = vor.u32 %v1247, %v1250
      %v1252 = vrot.slane %v1251, 4
      %v1254 = vshll.u32 %v1179, 16
      %v1256 = vrot.slane %v1254, 5
      %v1257 = vsel %vm201, %v1252, %v1256
      %v1258 = vshrl.u32 %v1179, 16
      %v1260 = vrot.slane %v1258, 4
      %v1261 = vor.u32 %v1260, %v1256
      %v1262 = vrot.slane %v1261, 4
      %v1264 = vshll.u32 %v1180, 16
      %v1266 = vrot.slane %v1264, 5
      %v1267 = vsel %vm201, %v1262, %v1266
      %v1269 = vshrl.u32 %v1181, 16
      %v1271 = vrot.slane %v1269, 4
      %v1272 = vshll.u32 %v1181, 16
      %v1274 = vrot.slane %v1272, 5
      %v1275 = vor.u32 %v1271, %v1274
      %v1276 = vrot.slane %v1275, 4
      %v1278 = vshll.u32 %v1182, 16
      %v1280 = vrot.slane %v1278, 5
      %v1281 = vsel %vm201, %v1276, %v1280
      %v1282 = vshrl.u32 %v1182, 16
      %v1284 = vrot.slane %v1282, 4
      %v1285 = vor.u32 %v1284, %v1280
      %v1286 = vrot.slane %v1285, 4
      %v1288 = vshll.u32 %v1183, 16
      %v1290 = vrot.slane %v1288, 5
      %v1291 = vsel %vm201, %v1286, %v1290
      %v1293 = vshrl.u32 %v1184, 16
      %v1295 = vrot.slane %v1293, 4
      %v1296 = vshll.u32 %v1184, 16
      %v1298 = vrot.slane %v1296, 5
      %v1299 = vor.u32 %v1295, %v1298
      %v1300 = vrot.slane %v1299, 4
      %v1302 = vshll.u32 %v1185, 16
      %v1304 = vrot.slane %v1302, 5
      %v1305 = vsel %vm201, %v1300, %v1304
      %v1306 = vshrl.u32 %v1185, 16
      %v1308 = vrot.slane %v1306, 4
      %v1309 = vor.u32 %v1308, %v1304
      %v1310 = vrot.slane %v1309, 4
      %v1312 = vshll.u32 %v1186, 16
      %v1314 = vrot.slane %v1312, 5
      %v1315 = vsel %vm201, %v1310, %v1314
      %v1317 = vshrl.u32 %v1187, 16
      %v1319 = vrot.slane %v1317, 4
      %v1320 = vshll.u32 %v1187, 16
      %v1322 = vrot.slane %v1320, 5
      %v1323 = vor.u32 %v1319, %v1322
      %v1324 = vrot.slane %v1323, 4
      %v1326 = vshll.u32 %v1188, 16
      %v1328 = vrot.slane %v1326, 5
      %v1329 = vsel %vm201, %v1324, %v1328
      %v1330 = vshrl.u32 %v1188, 16
      %v1332 = vrot.slane %v1330, 4
      %v1333 = vor.u32 %v1332, %v1328
      %v1334 = vrot.slane %v1333, 4
      %v1336 = vshll.u32 %v1189, 16
      %v1338 = vrot.slane %v1336, 5
      %v1339 = vsel %vm201, %v1334, %v1338
      %v1341 = vshrl.u32 %v1190, 16
      %v1343 = vrot.slane %v1341, 4
      %v1344 = vshll.u32 %v1190, 16
      %v1346 = vrot.slane %v1344, 5
      %v1347 = vor.u32 %v1343, %v1346
      %v1348 = vrot.slane %v1347, 4
      %v1350 = vshll.u32 %v1191, 16
      %v1352 = vrot.slane %v1350, 5
      %v1353 = vsel %vm201, %v1348, %v1352
      %v1354 = vshrl.u32 %v1191, 16
      %v1356 = vrot.slane %v1354, 4
      %v1357 = vor.u32 %v1356, %v1352
      %v1358 = vrot.slane %v1357, 4
      %v1360 = vshll.u32 %v1192, 16
      %v1362 = vrot.slane %v1360, 5
      %v1363 = vsel %vm201, %v1358, %v1362
      %v1365 = vshrl.u32 %v1193, 16
      %v1367 = vrot.slane %v1365, 4
      %v1368 = vshll.u32 %v1193, 16
      %v1370 = vrot.slane %v1368, 5
      %v1371 = vor.u32 %v1367, %v1370
      %v1372 = vrot.slane %v1371, 4
      %v1374 = vshll.u32 %v1194, 16
      %v1376 = vrot.slane %v1374, 5
      %v1377 = vsel %vm201, %v1372, %v1376
      %v1378 = vshrl.u32 %v1194, 16
      %v1380 = vrot.slane %v1378, 4
      %v1381 = vor.u32 %v1380, %v1376
      %v1382 = vrot.slane %v1381, 4
      %v1384 = vshll.u32 %v1195, 16
      %v1386 = vrot.slane %v1384, 5
      %v1387 = vsel %vm201, %v1382, %v1386
      %s1388 = scalar_lea.vmem %s1, 32
      %v1389 = vld [vmem:[%s1388] sm:$0xf]
      %v1390 = vld [vmem:[%s1388 + $0x4] sm:$0xf]
      %v1391 = vunpack.c.l.b16 %v1209
      %v1392 = vunpack.c.l.b16 %v1219
      %v1393 = vunpack.c.l.b16 %v1233
      %v1394 = vunpack.c.l.b16 %v1243
      %v1395 = vunpack.c.l.b16 %v1257
      %v1396 = vunpack.c.l.b16 %v1267
      %v1397 = vunpack.c.l.b16 %v1281
      %v1398 = vunpack.c.l.b16 %v1291
      %v1399 = vunpack.c.l.b16 %v1305
      %v1400 = vunpack.c.l.b16 %v1315
      %v1401 = vunpack.c.l.b16 %v1329
      %v1402 = vunpack.c.l.b16 %v1339
      %v1403 = vunpack.c.l.b16 %v1353
      %v1404 = vunpack.c.l.b16 %v1363
      %v1405 = vunpack.c.l.b16 %v1377
      %v1406 = vunpack.c.l.b16 %v1387
      %v1407 = vpack.c.b16 %v1392, %v1391
      %v1408 = vpack.c.b16 %v1394, %v1393
      %v1409 = vpack.c.b16 %v1396, %v1395
      %v1410 = vpack.c.b16 %v1398, %v1397
      %v1411 = vpack.c.b16 %v1400, %v1399
      %v1412 = vpack.c.b16 %v1402, %v1401
      %v1413 = vpack.c.b16 %v1404, %v1403
      %v1414 = vpack.c.b16 %v1406, %v1405
      %v1417 = vunpack.c.l.b16 %v1389
      %v1418 = vunpack.c.l.b16 %v1390
      %v1419 = vpack.c.b16 %v1418, %v1417
      %v1422 = vsel %vm427, %v1407, 0
      %v1425 = vsel %vm427, %v1408, 0
      %v1428 = vsel %vm427, %v1409, 0
      %v1431 = vsel %vm427, %v1410, 0
      %v1434 = vsel %vm427, %v1411, 0
      %v1437 = vsel %vm427, %v1412, 0
      %v1440 = vsel %vm427, %v1413, 0
      %v1443 = vsel %vm427, %v1414, 0
      %1445 = vmatprep.subr.bf16.mxu0 0
      %1446 = vmatpush1.bf16.msra.mxu0 0
      %1447 = vmatprep.subr.bf16.mxu0 0
      %1448 = vmatpush1.bf16.msra.mxu0 0
      %1449 = vmatprep.subr.bf16.mxu0 0
      %1450 = vmatpush1.bf16.msra.mxu0 0
      %1451 = vmatprep.subr.bf16.mxu0 0
      %1452 = vmatpush1.bf16.msra.mxu0 0
      %1453 = vmatprep.subr.bf16.mxu0 0
      %1454 = vmatpush1.bf16.msra.mxu0 0
      %1455 = vmatprep.subr.bf16.mxu0 0
      %1456 = vmatpush1.bf16.msra.mxu0 0
      %1457 = vmatprep.subr.bf16.mxu0 0
      %1458 = vmatpush1.bf16.msra.mxu0 0
      %1459 = vmatprep.subr.bf16.mxu0 0
      %1460 = vmatpush1.bf16.msra.mxu0 %v1419
      %1461 = vmatprep.subr.bf16.mxu0 0
      %1462 = vmatpush2.bf16.msra.mxu0 0
      %1463 = vmatprep.subr.bf16.mxu0 0
      %1464 = vmatpush2.bf16.msra.mxu0 0
      %1465 = vmatprep.subr.bf16.mxu0 0
      %1466 = vmatpush2.bf16.msra.mxu0 0
      %1467 = vmatprep.subr.bf16.mxu0 0
      %1468 = vmatpush2.bf16.msra.mxu0 0
      %1469 = vmatprep.subr.bf16.mxu0 0
      %1470 = vmatpush2.bf16.msra.mxu0 0
      %1471 = vmatprep.subr.bf16.mxu0 0
      %1472 = vmatpush2.bf16.msra.mxu0 0
      %1473 = vmatprep.subr.bf16.mxu0 0
      %1474 = vmatpush2.bf16.msra.mxu0 0
      %1475 = vmatprep.subr.bf16.mxu0 0
      %1476 = vmatpush2.bf16.msra.mxu0 0
      %1477 = vmatprep.mubr.bf16.mxu0 0
      %1478 = vmatmul.mubr.bf16.gmra.mxu0 %v1422
      %v1479 = vpop.f32.mrf.mxu0
      %v1480 = vadd.f32 0.0, %v1479
      %v1481 = vpop.f32.mrf.mxu0
      %v1482 = vpop.f32.mrf.mxu0
      %v1483 = vadd.f32 0.0, %v1482
      %v1484 = vpop.f32.mrf.mxu0
      %1485 = vmatprep.mubr.bf16.mxu0 0
      %1486 = vmatmul.mubr.bf16.gmra.mxu0 %v1425
      %v1487 = vpop.f32.mrf.mxu0
      %v1488 = vadd.f32 0.0, %v1487
      %v1489 = vpop.f32.mrf.mxu0
      %v1490 = vpop.f32.mrf.mxu0
      %v1491 = vadd.f32 0.0, %v1490
      %v1492 = vpop.f32.mrf.mxu0
      %1493 = vmatprep.mubr.bf16.mxu0 0
      %1494 = vmatmul.mubr.bf16.gmra.mxu0 %v1428
      %v1495 = vpop.f32.mrf.mxu0
      %v1496 = vadd.f32 0.0, %v1495
      %v1497 = vpop.f32.mrf.mxu0
      %v1498 = vpop.f32.mrf.mxu0
      %v1499 = vadd.f32 0.0, %v1498
      %v1500 = vpop.f32.mrf.mxu0
      %1501 = vmatprep.mubr.bf16.mxu0 0
      %1502 = vmatmul.mubr.bf16.gmra.mxu0 %v1431
      %v1503 = vpop.f32.mrf.mxu0
      %v1504 = vadd.f32 0.0, %v1503
      %v1505 = vpop.f32.mrf.mxu0
      %v1506 = vpop.f32.mrf.mxu0
      %v1507 = vadd.f32 0.0, %v1506
      %v1508 = vpop.f32.mrf.mxu0
      %1509 = vmatprep.mubr.bf16.mxu0 0
      %1510 = vmatmul.mubr.bf16.gmra.mxu0 %v1434
      %v1511 = vpop.f32.mrf.mxu0
      %v1512 = vadd.f32 0.0, %v1511
      %v1513 = vpop.f32.mrf.mxu0
      %v1514 = vpop.f32.mrf.mxu0
      %v1515 = vadd.f32 0.0, %v1514
      %v1516 = vpop.f32.mrf.mxu0
      %1517 = vmatprep.mubr.bf16.mxu0 0
      %1518 = vmatmul.mubr.bf16.gmra.mxu0 %v1437
      %v1519 = vpop.f32.mrf.mxu0
      %v1520 = vadd.f32 0.0, %v1519
      %v1521 = vpop.f32.mrf.mxu0
      %v1522 = vpop.f32.mrf.mxu0
      %v1523 = vadd.f32 0.0, %v1522
      %v1524 = vpop.f32.mrf.mxu0
      %1525 = vmatprep.mubr.bf16.mxu0 0
      %1526 = vmatmul.mubr.bf16.gmra.mxu0 %v1440
      %v1527 = vpop.f32.mrf.mxu0
      %v1528 = vadd.f32 0.0, %v1527
      %v1529 = vpop.f32.mrf.mxu0
      %v1530 = vpop.f32.mrf.mxu0
      %v1531 = vadd.f32 0.0, %v1530
      %v1532 = vpop.f32.mrf.mxu0
      %1533 = vmatprep.mubr.bf16.mxu0 0
      %1534 = vmatmul.mubr.bf16.gmra.mxu0 %v1443
      %v1535 = vpop.f32.mrf.mxu0
      %v1536 = vadd.f32 0.0, %v1535
      %v1537 = vpop.f32.mrf.mxu0
      %v1538 = vpop.f32.mrf.mxu0
      %v1539 = vadd.f32 0.0, %v1538
      %v1540 = vpop.f32.mrf.mxu0
      %1541 = vdwg.mxu0
      %v1542 = vadd.f32 %v1156, %v1480
      %v1543 = vadd.f32 %v1157, %v1483
      %v1544 = vadd.f32 %v1158, %v1488
      %v1545 = vadd.f32 %v1159, %v1491
      %v1546 = vadd.f32 %v1160, %v1496
      %v1547 = vadd.f32 %v1161, %v1499
      %v1548 = vadd.f32 %v1162, %v1504
      %v1549 = vadd.f32 %v1163, %v1507
      %v1550 = vadd.f32 %v1164, %v1512
      %v1551 = vadd.f32 %v1165, %v1515
      %v1552 = vadd.f32 %v1166, %v1520
      %v1553 = vadd.f32 %v1167, %v1523
      %v1554 = vadd.f32 %v1168, %v1528
      %v1555 = vadd.f32 %v1169, %v1531
      %v1556 = vadd.f32 %v1170, %v1536
      %v1557 = vadd.f32 %v1171, %v1539
      %v1558 = vld [vmem:[%s969] sm:$0xe]
      %v1559 = vld [vmem:[%s969 + $0xc] sm:$0xe]
      %v1560 = vld [vmem:[%s969 + $0x18] sm:$0xe]
      %v1561 = vld [vmem:[%s969 + $0x24] sm:$0xe]
      %v1562 = vld [vmem:[%s969 + $0x30] sm:$0xe]
      %v1563 = vld [vmem:[%s969 + $0x3c] sm:$0xe]
      %v1564 = vld [vmem:[%s969 + $0x48] sm:$0xe]
      %v1565 = vld [vmem:[%s969 + $0x54] sm:$0xe]
      %v1590 = vrot.slane %v1558, 5
      %v1591 = vrot.slane %v1590, 4
      %v1592 = vrot.slane %v1173, 5
      %v1593 = vsel %vm742, %v1591, %v1592
      %v1594 = vrot.slane %v1592, 4
      %v1595 = vrot.slane %v1174, 5
      %v1596 = vsel %vm742, %v1594, %v1595
      %v1597 = vrot.slane %v1559, 5
      %v1598 = vrot.slane %v1597, 4
      %v1599 = vrot.slane %v1176, 5
      %v1600 = vsel %vm742, %v1598, %v1599
      %v1601 = vrot.slane %v1599, 4
      %v1602 = vrot.slane %v1177, 5
      %v1603 = vsel %vm742, %v1601, %v1602
      %v1604 = vrot.slane %v1560, 5
      %v1605 = vrot.slane %v1604, 4
      %v1606 = vrot.slane %v1179, 5
      %v1607 = vsel %vm742, %v1605, %v1606
      %v1608 = vrot.slane %v1606, 4
      %v1609 = vrot.slane %v1180, 5
      %v1610 = vsel %vm742, %v1608, %v1609
      %v1611 = vrot.slane %v1561, 5
      %v1612 = vrot.slane %v1611, 4
      %v1613 = vrot.slane %v1182, 5
      %v1614 = vsel %vm742, %v1612, %v1613
      %v1615 = vrot.slane %v1613, 4
      %v1616 = vrot.slane %v1183, 5
      %v1617 = vsel %vm742, %v1615, %v1616
      %v1618 = vrot.slane %v1562, 5
      %v1619 = vrot.slane %v1618, 4
      %v1620 = vrot.slane %v1185, 5
      %v1621 = vsel %vm742, %v1619, %v1620
      %v1622 = vrot.slane %v1620, 4
      %v1623 = vrot.slane %v1186, 5
      %v1624 = vsel %vm742, %v1622, %v1623
      %v1625 = vrot.slane %v1563, 5
      %v1626 = vrot.slane %v1625, 4
      %v1627 = vrot.slane %v1188, 5
      %v1628 = vsel %vm742, %v1626, %v1627
      %v1629 = vrot.slane %v1627, 4
      %v1630 = vrot.slane %v1189, 5
      %v1631 = vsel %vm742, %v1629, %v1630
      %v1632 = vrot.slane %v1564, 5
      %v1633 = vrot.slane %v1632, 4
      %v1634 = vrot.slane %v1191, 5
      %v1635 = vsel %vm742, %v1633, %v1634
      %v1636 = vrot.slane %v1634, 4
      %v1637 = vrot.slane %v1192, 5
      %v1638 = vsel %vm742, %v1636, %v1637
      %v1639 = vrot.slane %v1565, 5
      %v1640 = vrot.slane %v1639, 4
      %v1641 = vrot.slane %v1194, 5
      %v1642 = vsel %vm742, %v1640, %v1641
      %v1643 = vrot.slane %v1641, 4
      %v1644 = vrot.slane %v1195, 5
      %v1645 = vsel %vm742, %v1643, %v1644
      %s1646 = scalar_lea.vmem %s1, 40
      %v1647 = vld [vmem:[%s1646] sm:$0xf]
      %v1648 = vld [vmem:[%s1646 + $0x4] sm:$0xf]
      %v1649 = vunpack.c.l.b16 %v1593
      %v1650 = vunpack.c.l.b16 %v1596
      %v1651 = vunpack.c.l.b16 %v1600
      %v1652 = vunpack.c.l.b16 %v1603
      %v1653 = vunpack.c.l.b16 %v1607
      %v1654 = vunpack.c.l.b16 %v1610
      %v1655 = vunpack.c.l.b16 %v1614
      %v1656 = vunpack.c.l.b16 %v1617
      %v1657 = vunpack.c.l.b16 %v1621
      %v1658 = vunpack.c.l.b16 %v1624
      %v1659 = vunpack.c.l.b16 %v1628
      %v1660 = vunpack.c.l.b16 %v1631
      %v1661 = vunpack.c.l.b16 %v1635
      %v1662 = vunpack.c.l.b16 %v1638
      %v1663 = vunpack.c.l.b16 %v1642
      %v1664 = vunpack.c.l.b16 %v1645
      %v1665 = vpack.c.b16 %v1650, %v1649
      %v1666 = vpack.c.b16 %v1652, %v1651
      %v1667 = vpack.c.b16 %v1654, %v1653
      %v1668 = vpack.c.b16 %v1656, %v1655
      %v1669 = vpack.c.b16 %v1658, %v1657
      %v1670 = vpack.c.b16 %v1660, %v1659
      %v1671 = vpack.c.b16 %v1662, %v1661
      %v1672 = vpack.c.b16 %v1664, %v1663
      %v1675 = vunpack.c.l.b16 %v1647
      %v1676 = vunpack.c.l.b16 %v1648
      %v1677 = vpack.c.b16 %v1676, %v1675
      %v1680 = vsel %vm427, %v1665, 0
      %v1683 = vsel %vm427, %v1666, 0
      %v1686 = vsel %vm427, %v1667, 0
      %v1689 = vsel %vm427, %v1668, 0
      %v1692 = vsel %vm427, %v1669, 0
      %v1695 = vsel %vm427, %v1670, 0
      %v1698 = vsel %vm427, %v1671, 0
      %v1701 = vsel %vm427, %v1672, 0
      %1703 = vmatprep.subr.bf16.mxu0 0
      %1704 = vmatpush1.bf16.msra.mxu0 0
      %1705 = vmatprep.subr.bf16.mxu0 0
      %1706 = vmatpush1.bf16.msra.mxu0 0
      %1707 = vmatprep.subr.bf16.mxu0 0
      %1708 = vmatpush1.bf16.msra.mxu0 0
      %1709 = vmatprep.subr.bf16.mxu0 0
      %1710 = vmatpush1.bf16.msra.mxu0 0
      %1711 = vmatprep.subr.bf16.mxu0 0
      %1712 = vmatpush1.bf16.msra.mxu0 0
      %1713 = vmatprep.subr.bf16.mxu0 0
      %1714 = vmatpush1.bf16.msra.mxu0 0
      %1715 = vmatprep.subr.bf16.mxu0 0
      %1716 = vmatpush1.bf16.msra.mxu0 0
      %1717 = vmatprep.subr.bf16.mxu0 0
      %1718 = vmatpush1.bf16.msra.mxu0 %v1677
      %1719 = vmatprep.subr.bf16.mxu0 0
      %1720 = vmatpush2.bf16.msra.mxu0 0
      %1721 = vmatprep.subr.bf16.mxu0 0
      %1722 = vmatpush2.bf16.msra.mxu0 0
      %1723 = vmatprep.subr.bf16.mxu0 0
      %1724 = vmatpush2.bf16.msra.mxu0 0
      %1725 = vmatprep.subr.bf16.mxu0 0
      %1726 = vmatpush2.bf16.msra.mxu0 0
      %1727 = vmatprep.subr.bf16.mxu0 0
      %1728 = vmatpush2.bf16.msra.mxu0 0
      %1729 = vmatprep.subr.bf16.mxu0 0
      %1730 = vmatpush2.bf16.msra.mxu0 0
      %1731 = vmatprep.subr.bf16.mxu0 0
      %1732 = vmatpush2.bf16.msra.mxu0 0
      %1733 = vmatprep.subr.bf16.mxu0 0
      %1734 = vmatpush2.bf16.msra.mxu0 0
      %1735 = vmatprep.mubr.bf16.mxu0 0
      %1736 = vmatmul.mubr.bf16.gmra.mxu0 %v1680
      %v1737 = vpop.f32.mrf.mxu0
      %v1738 = vadd.f32 0.0, %v1737
      %v1739 = vpop.f32.mrf.mxu0
      %v1740 = vpop.f32.mrf.mxu0
      %v1741 = vadd.f32 0.0, %v1740
      %v1742 = vpop.f32.mrf.mxu0
      %1743 = vmatprep.mubr.bf16.mxu0 0
      %1744 = vmatmul.mubr.bf16.gmra.mxu0 %v1683
      %v1745 = vpop.f32.mrf.mxu0
      %v1746 = vadd.f32 0.0, %v1745
      %v1747 = vpop.f32.mrf.mxu0
      %v1748 = vpop.f32.mrf.mxu0
      %v1749 = vadd.f32 0.0, %v1748
      %v1750 = vpop.f32.mrf.mxu0
      %1751 = vmatprep.mubr.bf16.mxu0 0
      %1752 = vmatmul.mubr.bf16.gmra.mxu0 %v1686
      %v1753 = vpop.f32.mrf.mxu0
      %v1754 = vadd.f32 0.0, %v1753
      %v1755 = vpop.f32.mrf.mxu0
      %v1756 = vpop.f32.mrf.mxu0
      %v1757 = vadd.f32 0.0, %v1756
      %v1758 = vpop.f32.mrf.mxu0
      %1759 = vmatprep.mubr.bf16.mxu0 0
      %1760 = vmatmul.mubr.bf16.gmra.mxu0 %v1689
      %v1761 = vpop.f32.mrf.mxu0
      %v1762 = vadd.f32 0.0, %v1761
      %v1763 = vpop.f32.mrf.mxu0
      %v1764 = vpop.f32.mrf.mxu0
      %v1765 = vadd.f32 0.0, %v1764
      %v1766 = vpop.f32.mrf.mxu0
      %1767 = vmatprep.mubr.bf16.mxu0 0
      %1768 = vmatmul.mubr.bf16.gmra.mxu0 %v1692
      %v1769 = vpop.f32.mrf.mxu0
      %v1770 = vadd.f32 0.0, %v1769
      %v1771 = vpop.f32.mrf.mxu0
      %v1772 = vpop.f32.mrf.mxu0
      %v1773 = vadd.f32 0.0, %v1772
      %v1774 = vpop.f32.mrf.mxu0
      %1775 = vmatprep.mubr.bf16.mxu0 0
      %1776 = vmatmul.mubr.bf16.gmra.mxu0 %v1695
      %v1777 = vpop.f32.mrf.mxu0
      %v1778 = vadd.f32 0.0, %v1777
      %v1779 = vpop.f32.mrf.mxu0
      %v1780 = vpop.f32.mrf.mxu0
      %v1781 = vadd.f32 0.0, %v1780
      %v1782 = vpop.f32.mrf.mxu0
      %1783 = vmatprep.mubr.bf16.mxu0 0
      %1784 = vmatmul.mubr.bf16.gmra.mxu0 %v1698
      %v1785 = vpop.f32.mrf.mxu0
      %v1786 = vadd.f32 0.0, %v1785
      %v1787 = vpop.f32.mrf.mxu0
      %v1788 = vpop.f32.mrf.mxu0
      %v1789 = vadd.f32 0.0, %v1788
      %v1790 = vpop.f32.mrf.mxu0
      %1791 = vmatprep.mubr.bf16.mxu0 0
      %1792 = vmatmul.mubr.bf16.gmra.mxu0 %v1701
      %v1793 = vpop.f32.mrf.mxu0
      %v1794 = vadd.f32 0.0, %v1793
      %v1795 = vpop.f32.mrf.mxu0
      %v1796 = vpop.f32.mrf.mxu0
      %v1797 = vadd.f32 0.0, %v1796
      %v1798 = vpop.f32.mrf.mxu0
      %1799 = vdwg.mxu0
      %v1800 = vadd.f32 %v1542, %v1738
      %v1801 = vadd.f32 %v1543, %v1741
      %v1802 = vadd.f32 %v1544, %v1746
      %v1803 = vadd.f32 %v1545, %v1749
      %v1804 = vadd.f32 %v1546, %v1754
      %v1805 = vadd.f32 %v1547, %v1757
      %v1806 = vadd.f32 %v1548, %v1762
      %v1807 = vadd.f32 %v1549, %v1765
      %v1808 = vadd.f32 %v1550, %v1770
      %v1809 = vadd.f32 %v1551, %v1773
      %v1810 = vadd.f32 %v1552, %v1778
      %v1811 = vadd.f32 %v1553, %v1781
      %v1812 = vadd.f32 %v1554, %v1786
      %v1813 = vadd.f32 %v1555, %v1789
      %v1814 = vadd.f32 %v1556, %v1794
      %v1815 = vadd.f32 %v1557, %v1797
      %s1816 = scalar_lea.vmem %s165, 24
      %v1817 = vld [vmem:[%s1816] sm:$0xf]
      %v1818 = vld [vmem:[%s1816 + $0x4] sm:$0xf]
      %v1819 = vld [vmem:[%s1816 + $0xc] sm:$0xf]
      %v1820 = vld [vmem:[%s1816 + $0x10] sm:$0xf]
      %v1821 = vld [vmem:[%s1816 + $0x18] sm:$0xf]
      %v1822 = vld [vmem:[%s1816 + $0x1c] sm:$0xf]
      %v1823 = vld [vmem:[%s1816 + $0x24] sm:$0xf]
      %v1824 = vld [vmem:[%s1816 + $0x28] sm:$0xf]
      %v1825 = vld [vmem:[%s1816 + $0x30] sm:$0xf]
      %v1826 = vld [vmem:[%s1816 + $0x34] sm:$0xf]
      %v1827 = vld [vmem:[%s1816 + $0x3c] sm:$0xf]
      %v1828 = vld [vmem:[%s1816 + $0x40] sm:$0xf]
      %v1829 = vld [vmem:[%s1816 + $0x48] sm:$0xf]
      %v1830 = vld [vmem:[%s1816 + $0x4c] sm:$0xf]
      %v1831 = vld [vmem:[%s1816 + $0x54] sm:$0xf]
      %v1832 = vld [vmem:[%s1816 + $0x58] sm:$0xf]
      %s1833 = scalar_lea.vmem %s1, 48
      %v1834 = vld [vmem:[%s1833] sm:$0xf]
      %v1835 = vld [vmem:[%s1833 + $0x4] sm:$0xf]
      %v1852 = vunpack.c.l.b16 %v1817
      %v1853 = vunpack.c.l.b16 %v1818
      %v1854 = vunpack.c.l.b16 %v1819
      %v1855 = vunpack.c.l.b16 %v1820
      %v1856 = vunpack.c.l.b16 %v1821
      %v1857 = vunpack.c.l.b16 %v1822
      %v1858 = vunpack.c.l.b16 %v1823
      %v1859 = vunpack.c.l.b16 %v1824
      %v1860 = vunpack.c.l.b16 %v1825
      %v1861 = vunpack.c.l.b16 %v1826
      %v1862 = vunpack.c.l.b16 %v1827
      %v1863 = vunpack.c.l.b16 %v1828
      %v1864 = vunpack.c.l.b16 %v1829
      %v1865 = vunpack.c.l.b16 %v1830
      %v1866 = vunpack.c.l.b16 %v1831
      %v1867 = vunpack.c.l.b16 %v1832
      %v1868 = vpack.c.b16 %v1853, %v1852
      %v1869 = vpack.c.b16 %v1855, %v1854
      %v1870 = vpack.c.b16 %v1857, %v1856
      %v1871 = vpack.c.b16 %v1859, %v1858
      %v1872 = vpack.c.b16 %v1861, %v1860
      %v1873 = vpack.c.b16 %v1863, %v1862
      %v1874 = vpack.c.b16 %v1865, %v1864
      %v1875 = vpack.c.b16 %v1867, %v1866
      %v1878 = vunpack.c.l.b16 %v1834
      %v1879 = vunpack.c.l.b16 %v1835
      %v1880 = vpack.c.b16 %v1879, %v1878
      %v1883 = vsel %vm427, %v1868, 0
      %v1886 = vsel %vm427, %v1869, 0
      %v1889 = vsel %vm427, %v1870, 0
      %v1892 = vsel %vm427, %v1871, 0
      %v1895 = vsel %vm427, %v1872, 0
      %v1898 = vsel %vm427, %v1873, 0
      %v1901 = vsel %vm427, %v1874, 0
      %v1904 = vsel %vm427, %v1875, 0
      %1906 = vmatprep.subr.bf16.mxu0 0
      %1907 = vmatpush1.bf16.msra.mxu0 0
      %1908 = vmatprep.subr.bf16.mxu0 0
      %1909 = vmatpush1.bf16.msra.mxu0 0
      %1910 = vmatprep.subr.bf16.mxu0 0
      %1911 = vmatpush1.bf16.msra.mxu0 0
      %1912 = vmatprep.subr.bf16.mxu0 0
      %1913 = vmatpush1.bf16.msra.mxu0 0
      %1914 = vmatprep.subr.bf16.mxu0 0
      %1915 = vmatpush1.bf16.msra.mxu0 0
      %1916 = vmatprep.subr.bf16.mxu0 0
      %1917 = vmatpush1.bf16.msra.mxu0 0
      %1918 = vmatprep.subr.bf16.mxu0 0
      %1919 = vmatpush1.bf16.msra.mxu0 0
      %1920 = vmatprep.subr.bf16.mxu0 0
      %1921 = vmatpush1.bf16.msra.mxu0 %v1880
      %1922 = vmatprep.subr.bf16.mxu0 0
      %1923 = vmatpush2.bf16.msra.mxu0 0
      %1924 = vmatprep.subr.bf16.mxu0 0
      %1925 = vmatpush2.bf16.msra.mxu0 0
      %1926 = vmatprep.subr.bf16.mxu0 0
      %1927 = vmatpush2.bf16.msra.mxu0 0
      %1928 = vmatprep.subr.bf16.mxu0 0
      %1929 = vmatpush2.bf16.msra.mxu0 0
      %1930 = vmatprep.subr.bf16.mxu0 0
      %1931 = vmatpush2.bf16.msra.mxu0 0
      %1932 = vmatprep.subr.bf16.mxu0 0
      %1933 = vmatpush2.bf16.msra.mxu0 0
      %1934 = vmatprep.subr.bf16.mxu0 0
      %1935 = vmatpush2.bf16.msra.mxu0 0
      %1936 = vmatprep.subr.bf16.mxu0 0
      %1937 = vmatpush2.bf16.msra.mxu0 0
      %1938 = vmatprep.mubr.bf16.mxu0 0
      %1939 = vmatmul.mubr.bf16.gmra.mxu0 %v1883
      %v1940 = vpop.f32.mrf.mxu0
      %v1941 = vadd.f32 0.0, %v1940
      %v1942 = vpop.f32.mrf.mxu0
      %v1943 = vpop.f32.mrf.mxu0
      %v1944 = vadd.f32 0.0, %v1943
      %v1945 = vpop.f32.mrf.mxu0
      %1946 = vmatprep.mubr.bf16.mxu0 0
      %1947 = vmatmul.mubr.bf16.gmra.mxu0 %v1886
      %v1948 = vpop.f32.mrf.mxu0
      %v1949 = vadd.f32 0.0, %v1948
      %v1950 = vpop.f32.mrf.mxu0
      %v1951 = vpop.f32.mrf.mxu0
      %v1952 = vadd.f32 0.0, %v1951
      %v1953 = vpop.f32.mrf.mxu0
      %1954 = vmatprep.mubr.bf16.mxu0 0
      %1955 = vmatmul.mubr.bf16.gmra.mxu0 %v1889
      %v1956 = vpop.f32.mrf.mxu0
      %v1957 = vadd.f32 0.0, %v1956
      %v1958 = vpop.f32.mrf.mxu0
      %v1959 = vpop.f32.mrf.mxu0
      %v1960 = vadd.f32 0.0, %v1959
      %v1961 = vpop.f32.mrf.mxu0
      %1962 = vmatprep.mubr.bf16.mxu0 0
      %1963 = vmatmul.mubr.bf16.gmra.mxu0 %v1892
      %v1964 = vpop.f32.mrf.mxu0
      %v1965 = vadd.f32 0.0, %v1964
      %v1966 = vpop.f32.mrf.mxu0
      %v1967 = vpop.f32.mrf.mxu0
      %v1968 = vadd.f32 0.0, %v1967
      %v1969 = vpop.f32.mrf.mxu0
      %1970 = vmatprep.mubr.bf16.mxu0 0
      %1971 = vmatmul.mubr.bf16.gmra.mxu0 %v1895
      %v1972 = vpop.f32.mrf.mxu0
      %v1973 = vadd.f32 0.0, %v1972
      %v1974 = vpop.f32.mrf.mxu0
      %v1975 = vpop.f32.mrf.mxu0
      %v1976 = vadd.f32 0.0, %v1975
      %v1977 = vpop.f32.mrf.mxu0
      %1978 = vmatprep.mubr.bf16.mxu0 0
      %1979 = vmatmul.mubr.bf16.gmra.mxu0 %v1898
      %v1980 = vpop.f32.mrf.mxu0
      %v1981 = vadd.f32 0.0, %v1980
      %v1982 = vpop.f32.mrf.mxu0
      %v1983 = vpop.f32.mrf.mxu0
      %v1984 = vadd.f32 0.0, %v1983
      %v1985 = vpop.f32.mrf.mxu0
      %1986 = vmatprep.mubr.bf16.mxu0 0
      %1987 = vmatmul.mubr.bf16.gmra.mxu0 %v1901
      %v1988 = vpop.f32.mrf.mxu0
      %v1989 = vadd.f32 0.0, %v1988
      %v1990 = vpop.f32.mrf.mxu0
      %v1991 = vpop.f32.mrf.mxu0
      %v1992 = vadd.f32 0.0, %v1991
      %v1993 = vpop.f32.mrf.mxu0
      %1994 = vmatprep.mubr.bf16.mxu0 0
      %1995 = vmatmul.mubr.bf16.gmra.mxu0 %v1904
      %v1996 = vpop.f32.mrf.mxu0
      %v1997 = vadd.f32 0.0, %v1996
      %v1998 = vpop.f32.mrf.mxu0
      %v1999 = vpop.f32.mrf.mxu0
      %v2000 = vadd.f32 0.0, %v1999
      %v2001 = vpop.f32.mrf.mxu0
      %2002 = vdwg.mxu0
      %v2003 = vadd.f32 %v1800, %v1941
      %v2004 = vadd.f32 %v1801, %v1944
      %v2005 = vadd.f32 %v1802, %v1949
      %v2006 = vadd.f32 %v1803, %v1952
      %v2007 = vadd.f32 %v1804, %v1957
      %v2008 = vadd.f32 %v1805, %v1960
      %v2009 = vadd.f32 %v1806, %v1965
      %v2010 = vadd.f32 %v1807, %v1968
      %v2011 = vadd.f32 %v1808, %v1973
      %v2012 = vadd.f32 %v1809, %v1976
      %v2013 = vadd.f32 %v1810, %v1981
      %v2014 = vadd.f32 %v1811, %v1984
      %v2015 = vadd.f32 %v1812, %v1989
      %v2016 = vadd.f32 %v1813, %v1992
      %v2017 = vadd.f32 %v1814, %v1997
      %v2018 = vadd.f32 %v1815, %v2000
      %v2019 = vld [vmem:[%s1816] sm:$0xf]
      %v2020 = vld [vmem:[%s1816 + $0x4] sm:$0xf]
      %v2021 = vld [vmem:[%s1816 + $0x8] sm:$0x1]
      %v2022 = vld [vmem:[%s1816 + $0xc] sm:$0xf]
      %v2023 = vld [vmem:[%s1816 + $0x10] sm:$0xf]
      %v2024 = vld [vmem:[%s1816 + $0x14] sm:$0x1]
      %v2025 = vld [vmem:[%s1816 + $0x18] sm:$0xf]
      %v2026 = vld [vmem:[%s1816 + $0x1c] sm:$0xf]
      %v2027 = vld [vmem:[%s1816 + $0x20] sm:$0x1]
      %v2028 = vld [vmem:[%s1816 + $0x24] sm:$0xf]
      %v2029 = vld [vmem:[%s1816 + $0x28] sm:$0xf]
      %v2030 = vld [vmem:[%s1816 + $0x2c] sm:$0x1]
      %v2031 = vld [vmem:[%s1816 + $0x30] sm:$0xf]
      %v2032 = vld [vmem:[%s1816 + $0x34] sm:$0xf]
      %v2033 = vld [vmem:[%s1816 + $0x38] sm:$0x1]
      %v2034 = vld [vmem:[%s1816 + $0x3c] sm:$0xf]
      %v2035 = vld [vmem:[%s1816 + $0x40] sm:$0xf]
      %v2036 = vld [vmem:[%s1816 + $0x44] sm:$0x1]
      %v2037 = vld [vmem:[%s1816 + $0x48] sm:$0xf]
      %v2038 = vld [vmem:[%s1816 + $0x4c] sm:$0xf]
      %v2039 = vld [vmem:[%s1816 + $0x50] sm:$0x1]
      %v2040 = vld [vmem:[%s1816 + $0x54] sm:$0xf]
      %v2041 = vld [vmem:[%s1816 + $0x58] sm:$0xf]
      %v2042 = vld [vmem:[%s1816 + $0x5c] sm:$0x1]
      %v2044 = vshrl.u32 %v2019, 16
      %v2046 = vrot.slane %v2044, 4
      %v2047 = vshll.u32 %v2019, 16
      %v2049 = vrot.slane %v2047, 5
      %v2050 = vor.u32 %v2046, %v2049
      %v2051 = vrot.slane %v2050, 4
      %v2053 = vshll.u32 %v2020, 16
      %v2055 = vrot.slane %v2053, 5
      %v2056 = vsel %vm201, %v2051, %v2055
      %v2057 = vshrl.u32 %v2020, 16
      %v2059 = vrot.slane %v2057, 4
      %v2060 = vor.u32 %v2059, %v2055
      %v2061 = vrot.slane %v2060, 4
      %v2063 = vshll.u32 %v2021, 16
      %v2065 = vrot.slane %v2063, 5
      %v2066 = vsel %vm201, %v2061, %v2065
      %v2068 = vshrl.u32 %v2022, 16
      %v2070 = vrot.slane %v2068, 4
      %v2071 = vshll.u32 %v2022, 16
      %v2073 = vrot.slane %v2071, 5
      %v2074 = vor.u32 %v2070, %v2073
      %v2075 = vrot.slane %v2074, 4
      %v2077 = vshll.u32 %v2023, 16
      %v2079 = vrot.slane %v2077, 5
      %v2080 = vsel %vm201, %v2075, %v2079
      %v2081 = vshrl.u32 %v2023, 16
      %v2083 = vrot.slane %v2081, 4
      %v2084 = vor.u32 %v2083, %v2079
      %v2085 = vrot.slane %v2084, 4
      %v2087 = vshll.u32 %v2024, 16
      %v2089 = vrot.slane %v2087, 5
      %v2090 = vsel %vm201, %v2085, %v2089
      %v2092 = vshrl.u32 %v2025, 16
      %v2094 = vrot.slane %v2092, 4
      %v2095 = vshll.u32 %v2025, 16
      %v2097 = vrot.slane %v2095, 5
      %v2098 = vor.u32 %v2094, %v2097
      %v2099 = vrot.slane %v2098, 4
      %v2101 = vshll.u32 %v2026, 16
      %v2103 = vrot.slane %v2101, 5
      %v2104 = vsel %vm201, %v2099, %v2103
      %v2105 = vshrl.u32 %v2026, 16
      %v2107 = vrot.slane %v2105, 4
      %v2108 = vor.u32 %v2107, %v2103
      %v2109 = vrot.slane %v2108, 4
      %v2111 = vshll.u32 %v2027, 16
      %v2113 = vrot.slane %v2111, 5
      %v2114 = vsel %vm201, %v2109, %v2113
      %v2116 = vshrl.u32 %v2028, 16
      %v2118 = vrot.slane %v2116, 4
      %v2119 = vshll.u32 %v2028, 16
      %v2121 = vrot.slane %v2119, 5
      %v2122 = vor.u32 %v2118, %v2121
      %v2123 = vrot.slane %v2122, 4
      %v2125 = vshll.u32 %v2029, 16
      %v2127 = vrot.slane %v2125, 5
      %v2128 = vsel %vm201, %v2123, %v2127
      %v2129 = vshrl.u32 %v2029, 16
      %v2131 = vrot.slane %v2129, 4
      %v2132 = vor.u32 %v2131, %v2127
      %v2133 = vrot.slane %v2132, 4
      %v2135 = vshll.u32 %v2030, 16
      %v2137 = vrot.slane %v2135, 5
      %v2138 = vsel %vm201, %v2133, %v2137
      %v2140 = vshrl.u32 %v2031, 16
      %v2142 = vrot.slane %v2140, 4
      %v2143 = vshll.u32 %v2031, 16
      %v2145 = vrot.slane %v2143, 5
      %v2146 = vor.u32 %v2142, %v2145
      %v2147 = vrot.slane %v2146, 4
      %v2149 = vshll.u32 %v2032, 16
      %v2151 = vrot.slane %v2149, 5
      %v2152 = vsel %vm201, %v2147, %v2151
      %v2153 = vshrl.u32 %v2032, 16
      %v2155 = vrot.slane %v2153, 4
      %v2156 = vor.u32 %v2155, %v2151
      %v2157 = vrot.slane %v2156, 4
      %v2159 = vshll.u32 %v2033, 16
      %v2161 = vrot.slane %v2159, 5
      %v2162 = vsel %vm201, %v2157, %v2161
      %v2164 = vshrl.u32 %v2034, 16
      %v2166 = vrot.slane %v2164, 4
      %v2167 = vshll.u32 %v2034, 16
      %v2169 = vrot.slane %v2167, 5
      %v2170 = vor.u32 %v2166, %v2169
      %v2171 = vrot.slane %v2170, 4
      %v2173 = vshll.u32 %v2035, 16
      %v2175 = vrot.slane %v2173, 5
      %v2176 = vsel %vm201, %v2171, %v2175
      %v2177 = vshrl.u32 %v2035, 16
      %v2179 = vrot.slane %v2177, 4
      %v2180 = vor.u32 %v2179, %v2175
      %v2181 = vrot.slane %v2180, 4
      %v2183 = vshll.u32 %v2036, 16
      %v2185 = vrot.slane %v2183, 5
      %v2186 = vsel %vm201, %v2181, %v2185
      %v2188 = vshrl.u32 %v2037, 16
      %v2190 = vrot.slane %v2188, 4
      %v2191 = vshll.u32 %v2037, 16
      %v2193 = vrot.slane %v2191, 5
      %v2194 = vor.u32 %v2190, %v2193
      %v2195 = vrot.slane %v2194, 4
      %v2197 = vshll.u32 %v2038, 16
      %v2199 = vrot.slane %v2197, 5
      %v2200 = vsel %vm201, %v2195, %v2199
      %v2201 = vshrl.u32 %v2038, 16
      %v2203 = vrot.slane %v2201, 4
      %v2204 = vor.u32 %v2203, %v2199
      %v2205 = vrot.slane %v2204, 4
      %v2207 = vshll.u32 %v2039, 16
      %v2209 = vrot.slane %v2207, 5
      %v2210 = vsel %vm201, %v2205, %v2209
      %v2212 = vshrl.u32 %v2040, 16
      %v2214 = vrot.slane %v2212, 4
      %v2215 = vshll.u32 %v2040, 16
      %v2217 = vrot.slane %v2215, 5
      %v2218 = vor.u32 %v2214, %v2217
      %v2219 = vrot.slane %v2218, 4
      %v2221 = vshll.u32 %v2041, 16
      %v2223 = vrot.slane %v2221, 5
      %v2224 = vsel %vm201, %v2219, %v2223
      %v2225 = vshrl.u32 %v2041, 16
      %v2227 = vrot.slane %v2225, 4
      %v2228 = vor.u32 %v2227, %v2223
      %v2229 = vrot.slane %v2228, 4
      %v2231 = vshll.u32 %v2042, 16
      %v2233 = vrot.slane %v2231, 5
      %v2234 = vsel %vm201, %v2229, %v2233
      %s2235 = scalar_lea.vmem %s1, 56
      %v2236 = vld [vmem:[%s2235] sm:$0xf]
      %v2237 = vld [vmem:[%s2235 + $0x4] sm:$0xf]
      %v2238 = vunpack.c.l.b16 %v2056
      %v2239 = vunpack.c.l.b16 %v2066
      %v2240 = vunpack.c.l.b16 %v2080
      %v2241 = vunpack.c.l.b16 %v2090
      %v2242 = vunpack.c.l.b16 %v2104
      %v2243 = vunpack.c.l.b16 %v2114
      %v2244 = vunpack.c.l.b16 %v2128
      %v2245 = vunpack.c.l.b16 %v2138
      %v2246 = vunpack.c.l.b16 %v2152
      %v2247 = vunpack.c.l.b16 %v2162
      %v2248 = vunpack.c.l.b16 %v2176
      %v2249 = vunpack.c.l.b16 %v2186
      %v2250 = vunpack.c.l.b16 %v2200
      %v2251 = vunpack.c.l.b16 %v2210
      %v2252 = vunpack.c.l.b16 %v2224
      %v2253 = vunpack.c.l.b16 %v2234
      %v2254 = vpack.c.b16 %v2239, %v2238
      %v2255 = vpack.c.b16 %v2241, %v2240
      %v2256 = vpack.c.b16 %v2243, %v2242
      %v2257 = vpack.c.b16 %v2245, %v2244
      %v2258 = vpack.c.b16 %v2247, %v2246
      %v2259 = vpack.c.b16 %v2249, %v2248
      %v2260 = vpack.c.b16 %v2251, %v2250
      %v2261 = vpack.c.b16 %v2253, %v2252
      %v2264 = vunpack.c.l.b16 %v2236
      %v2265 = vunpack.c.l.b16 %v2237
      %v2266 = vpack.c.b16 %v2265, %v2264
      %v2269 = vsel %vm427, %v2254, 0
      %v2272 = vsel %vm427, %v2255, 0
      %v2275 = vsel %vm427, %v2256, 0
      %v2278 = vsel %vm427, %v2257, 0
      %v2281 = vsel %vm427, %v2258, 0
      %v2284 = vsel %vm427, %v2259, 0
      %v2287 = vsel %vm427, %v2260, 0
      %v2290 = vsel %vm427, %v2261, 0
      %2292 = vmatprep.subr.bf16.mxu0 0
      %2293 = vmatpush1.bf16.msra.mxu0 0
      %2294 = vmatprep.subr.bf16.mxu0 0
      %2295 = vmatpush1.bf16.msra.mxu0 0
      %2296 = vmatprep.subr.bf16.mxu0 0
      %2297 = vmatpush1.bf16.msra.mxu0 0
      %2298 = vmatprep.subr.bf16.mxu0 0
      %2299 = vmatpush1.bf16.msra.mxu0 0
      %2300 = vmatprep.subr.bf16.mxu0 0
      %2301 = vmatpush1.bf16.msra.mxu0 0
      %2302 = vmatprep.subr.bf16.mxu0 0
      %2303 = vmatpush1.bf16.msra.mxu0 0
      %2304 = vmatprep.subr.bf16.mxu0 0
      %2305 = vmatpush1.bf16.msra.mxu0 0
      %2306 = vmatprep.subr.bf16.mxu0 0
      %2307 = vmatpush1.bf16.msra.mxu0 %v2266
      %2308 = vmatprep.subr.bf16.mxu0 0
      %2309 = vmatpush2.bf16.msra.mxu0 0
      %2310 = vmatprep.subr.bf16.mxu0 0
      %2311 = vmatpush2.bf16.msra.mxu0 0
      %2312 = vmatprep.subr.bf16.mxu0 0
      %2313 = vmatpush2.bf16.msra.mxu0 0
      %2314 = vmatprep.subr.bf16.mxu0 0
      %2315 = vmatpush2.bf16.msra.mxu0 0
      %2316 = vmatprep.subr.bf16.mxu0 0
      %2317 = vmatpush2.bf16.msra.mxu0 0
      %2318 = vmatprep.subr.bf16.mxu0 0
      %2319 = vmatpush2.bf16.msra.mxu0 0
      %2320 = vmatprep.subr.bf16.mxu0 0
      %2321 = vmatpush2.bf16.msra.mxu0 0
      %2322 = vmatprep.subr.bf16.mxu0 0
      %2323 = vmatpush2.bf16.msra.mxu0 0
      %2324 = vmatprep.mubr.bf16.mxu0 0
      %2325 = vmatmul.mubr.bf16.gmra.mxu0 %v2269
      %v2326 = vpop.f32.mrf.mxu0
      %v2327 = vadd.f32 0.0, %v2326
      %v2328 = vpop.f32.mrf.mxu0
      %v2329 = vpop.f32.mrf.mxu0
      %v2330 = vadd.f32 0.0, %v2329
      %v2331 = vpop.f32.mrf.mxu0
      %2332 = vmatprep.mubr.bf16.mxu0 0
      %2333 = vmatmul.mubr.bf16.gmra.mxu0 %v2272
      %v2334 = vpop.f32.mrf.mxu0
      %v2335 = vadd.f32 0.0, %v2334
      %v2336 = vpop.f32.mrf.mxu0
      %v2337 = vpop.f32.mrf.mxu0
      %v2338 = vadd.f32 0.0, %v2337
      %v2339 = vpop.f32.mrf.mxu0
      %2340 = vmatprep.mubr.bf16.mxu0 0
      %2341 = vmatmul.mubr.bf16.gmra.mxu0 %v2275
      %v2342 = vpop.f32.mrf.mxu0
      %v2343 = vadd.f32 0.0, %v2342
      %v2344 = vpop.f32.mrf.mxu0
      %v2345 = vpop.f32.mrf.mxu0
      %v2346 = vadd.f32 0.0, %v2345
      %v2347 = vpop.f32.mrf.mxu0
      %2348 = vmatprep.mubr.bf16.mxu0 0
      %2349 = vmatmul.mubr.bf16.gmra.mxu0 %v2278
      %v2350 = vpop.f32.mrf.mxu0
      %v2351 = vadd.f32 0.0, %v2350
      %v2352 = vpop.f32.mrf.mxu0
      %v2353 = vpop.f32.mrf.mxu0
      %v2354 = vadd.f32 0.0, %v2353
      %v2355 = vpop.f32.mrf.mxu0
      %2356 = vmatprep.mubr.bf16.mxu0 0
      %2357 = vmatmul.mubr.bf16.gmra.mxu0 %v2281
      %v2358 = vpop.f32.mrf.mxu0
      %v2359 = vadd.f32 0.0, %v2358
      %v2360 = vpop.f32.mrf.mxu0
      %v2361 = vpop.f32.mrf.mxu0
      %v2362 = vadd.f32 0.0, %v2361
      %v2363 = vpop.f32.mrf.mxu0
      %2364 = vmatprep.mubr.bf16.mxu0 0
      %2365 = vmatmul.mubr.bf16.gmra.mxu0 %v2284
      %v2366 = vpop.f32.mrf.mxu0
      %v2367 = vadd.f32 0.0, %v2366
      %v2368 = vpop.f32.mrf.mxu0
      %v2369 = vpop.f32.mrf.mxu0
      %v2370 = vadd.f32 0.0, %v2369
      %v2371 = vpop.f32.mrf.mxu0
      %2372 = vmatprep.mubr.bf16.mxu0 0
      %2373 = vmatmul.mubr.bf16.gmra.mxu0 %v2287
      %v2374 = vpop.f32.mrf.mxu0
      %v2375 = vadd.f32 0.0, %v2374
      %v2376 = vpop.f32.mrf.mxu0
      %v2377 = vpop.f32.mrf.mxu0
      %v2378 = vadd.f32 0.0, %v2377
      %v2379 = vpop.f32.mrf.mxu0
      %2380 = vmatprep.mubr.bf16.mxu0 0
      %2381 = vmatmul.mubr.bf16.gmra.mxu0 %v2290
      %v2382 = vpop.f32.mrf.mxu0
      %v2383 = vadd.f32 0.0, %v2382
      %v2384 = vpop.f32.mrf.mxu0
      %v2385 = vpop.f32.mrf.mxu0
      %v2386 = vadd.f32 0.0, %v2385
      %v2387 = vpop.f32.mrf.mxu0
      %2388 = vdwg.mxu0
      %v2389 = vadd.f32 %v2003, %v2327
      %v2390 = vadd.f32 %v2004, %v2330
      %v2391 = vadd.f32 %v2005, %v2335
      %v2392 = vadd.f32 %v2006, %v2338
      %v2393 = vadd.f32 %v2007, %v2343
      %v2394 = vadd.f32 %v2008, %v2346
      %v2395 = vadd.f32 %v2009, %v2351
      %v2396 = vadd.f32 %v2010, %v2354
      %v2397 = vadd.f32 %v2011, %v2359
      %v2398 = vadd.f32 %v2012, %v2362
      %v2399 = vadd.f32 %v2013, %v2367
      %v2400 = vadd.f32 %v2014, %v2370
      %v2401 = vadd.f32 %v2015, %v2375
      %v2402 = vadd.f32 %v2016, %v2378
      %v2403 = vadd.f32 %v2017, %v2383
      %v2404 = vadd.f32 %v2018, %v2386
      %v2405 = vld [vmem:[%s1816] sm:$0xe]
      %v2406 = vld [vmem:[%s1816 + $0xc] sm:$0xe]
      %v2407 = vld [vmem:[%s1816 + $0x18] sm:$0xe]
      %v2408 = vld [vmem:[%s1816 + $0x24] sm:$0xe]
      %v2409 = vld [vmem:[%s1816 + $0x30] sm:$0xe]
      %v2410 = vld [vmem:[%s1816 + $0x3c] sm:$0xe]
      %v2411 = vld [vmem:[%s1816 + $0x48] sm:$0xe]
      %v2412 = vld [vmem:[%s1816 + $0x54] sm:$0xe]
      %v2437 = vrot.slane %v2405, 5
      %v2438 = vrot.slane %v2437, 4
      %v2439 = vrot.slane %v2020, 5
      %v2440 = vsel %vm742, %v2438, %v2439
      %v2441 = vrot.slane %v2439, 4
      %v2442 = vrot.slane %v2021, 5
      %v2443 = vsel %vm742, %v2441, %v2442
      %v2444 = vrot.slane %v2406, 5
      %v2445 = vrot.slane %v2444, 4
      %v2446 = vrot.slane %v2023, 5
      %v2447 = vsel %vm742, %v2445, %v2446
      %v2448 = vrot.slane %v2446, 4
      %v2449 = vrot.slane %v2024, 5
      %v2450 = vsel %vm742, %v2448, %v2449
      %v2451 = vrot.slane %v2407, 5
      %v2452 = vrot.slane %v2451, 4
      %v2453 = vrot.slane %v2026, 5
      %v2454 = vsel %vm742, %v2452, %v2453
      %v2455 = vrot.slane %v2453, 4
      %v2456 = vrot.slane %v2027, 5
      %v2457 = vsel %vm742, %v2455, %v2456
      %v2458 = vrot.slane %v2408, 5
      %v2459 = vrot.slane %v2458, 4
      %v2460 = vrot.slane %v2029, 5
      %v2461 = vsel %vm742, %v2459, %v2460
      %v2462 = vrot.slane %v2460, 4
      %v2463 = vrot.slane %v2030, 5
      %v2464 = vsel %vm742, %v2462, %v2463
      %v2465 = vrot.slane %v2409, 5
      %v2466 = vrot.slane %v2465, 4
      %v2467 = vrot.slane %v2032, 5
      %v2468 = vsel %vm742, %v2466, %v2467
      %v2469 = vrot.slane %v2467, 4
      %v2470 = vrot.slane %v2033, 5
      %v2471 = vsel %vm742, %v2469, %v2470
      %v2472 = vrot.slane %v2410, 5
      %v2473 = vrot.slane %v2472, 4
      %v2474 = vrot.slane %v2035, 5
      %v2475 = vsel %vm742, %v2473, %v2474
      %v2476 = vrot.slane %v2474, 4
      %v2477 = vrot.slane %v2036, 5
      %v2478 = vsel %vm742, %v2476, %v2477
      %v2479 = vrot.slane %v2411, 5
      %v2480 = vrot.slane %v2479, 4
      %v2481 = vrot.slane %v2038, 5
      %v2482 = vsel %vm742, %v2480, %v2481
      %v2483 = vrot.slane %v2481, 4
      %v2484 = vrot.slane %v2039, 5
      %v2485 = vsel %vm742, %v2483, %v2484
      %v2486 = vrot.slane %v2412, 5
      %v2487 = vrot.slane %v2486, 4
      %v2488 = vrot.slane %v2041, 5
      %v2489 = vsel %vm742, %v2487, %v2488
      %v2490 = vrot.slane %v2488, 4
      %v2491 = vrot.slane %v2042, 5
      %v2492 = vsel %vm742, %v2490, %v2491
      %s2493 = scalar_lea.vmem %s1, 64
      %v2494 = vld [vmem:[%s2493] sm:$0xf]
      %v2495 = vld [vmem:[%s2493 + $0x4] sm:$0xf]
      %v2496 = vunpack.c.l.b16 %v2440
      %v2497 = vunpack.c.l.b16 %v2443
      %v2498 = vunpack.c.l.b16 %v2447
      %v2499 = vunpack.c.l.b16 %v2450
      %v2500 = vunpack.c.l.b16 %v2454
      %v2501 = vunpack.c.l.b16 %v2457
      %v2502 = vunpack.c.l.b16 %v2461
      %v2503 = vunpack.c.l.b16 %v2464
      %v2504 = vunpack.c.l.b16 %v2468
      %v2505 = vunpack.c.l.b16 %v2471
      %v2506 = vunpack.c.l.b16 %v2475
      %v2507 = vunpack.c.l.b16 %v2478
      %v2508 = vunpack.c.l.b16 %v2482
      %v2509 = vunpack.c.l.b16 %v2485
      %v2510 = vunpack.c.l.b16 %v2489
      %v2511 = vunpack.c.l.b16 %v2492
      %v2512 = vpack.c.b16 %v2497, %v2496
      %v2513 = vpack.c.b16 %v2499, %v2498
      %v2514 = vpack.c.b16 %v2501, %v2500
      %v2515 = vpack.c.b16 %v2503, %v2502
      %v2516 = vpack.c.b16 %v2505, %v2504
      %v2517 = vpack.c.b16 %v2507, %v2506
      %v2518 = vpack.c.b16 %v2509, %v2508
      %v2519 = vpack.c.b16 %v2511, %v2510
      %v2522 = vunpack.c.l.b16 %v2494
      %v2523 = vunpack.c.l.b16 %v2495
      %v2524 = vpack.c.b16 %v2523, %v2522
      %v2527 = vsel %vm427, %v2512, 0
      %v2530 = vsel %vm427, %v2513, 0
      %v2533 = vsel %vm427, %v2514, 0
      %v2536 = vsel %vm427, %v2515, 0
      %v2539 = vsel %vm427, %v2516, 0
      %v2542 = vsel %vm427, %v2517, 0
      %v2545 = vsel %vm427, %v2518, 0
      %v2548 = vsel %vm427, %v2519, 0
      %2550 = vmatprep.subr.bf16.mxu0 0
      %2551 = vmatpush1.bf16.msra.mxu0 0
      %2552 = vmatprep.subr.bf16.mxu0 0
      %2553 = vmatpush1.bf16.msra.mxu0 0
      %2554 = vmatprep.subr.bf16.mxu0 0
      %2555 = vmatpush1.bf16.msra.mxu0 0
      %2556 = vmatprep.subr.bf16.mxu0 0
      %2557 = vmatpush1.bf16.msra.mxu0 0
      %2558 = vmatprep.subr.bf16.mxu0 0
      %2559 = vmatpush1.bf16.msra.mxu0 0
      %2560 = vmatprep.subr.bf16.mxu0 0
      %2561 = vmatpush1.bf16.msra.mxu0 0
      %2562 = vmatprep.subr.bf16.mxu0 0
      %2563 = vmatpush1.bf16.msra.mxu0 0
      %2564 = vmatprep.subr.bf16.mxu0 0
      %2565 = vmatpush1.bf16.msra.mxu0 %v2524
      %2566 = vmatprep.subr.bf16.mxu0 0
      %2567 = vmatpush2.bf16.msra.mxu0 0
      %2568 = vmatprep.subr.bf16.mxu0 0
      %2569 = vmatpush2.bf16.msra.mxu0 0
      %2570 = vmatprep.subr.bf16.mxu0 0
      %2571 = vmatpush2.bf16.msra.mxu0 0
      %2572 = vmatprep.subr.bf16.mxu0 0
      %2573 = vmatpush2.bf16.msra.mxu0 0
      %2574 = vmatprep.subr.bf16.mxu0 0
      %2575 = vmatpush2.bf16.msra.mxu0 0
      %2576 = vmatprep.subr.bf16.mxu0 0
      %2577 = vmatpush2.bf16.msra.mxu0 0
      %2578 = vmatprep.subr.bf16.mxu0 0
      %2579 = vmatpush2.bf16.msra.mxu0 0
      %2580 = vmatprep.subr.bf16.mxu0 0
      %2581 = vmatpush2.bf16.msra.mxu0 0
      %2582 = vmatprep.mubr.bf16.mxu0 0
      %2583 = vmatmul.mubr.bf16.gmra.mxu0 %v2527
      %v2584 = vpop.f32.mrf.mxu0
      %v2585 = vadd.f32 0.0, %v2584
      %v2586 = vpop.f32.mrf.mxu0
      %v2587 = vpop.f32.mrf.mxu0
      %v2588 = vadd.f32 0.0, %v2587
      %v2589 = vpop.f32.mrf.mxu0
      %2590 = vmatprep.mubr.bf16.mxu0 0
      %2591 = vmatmul.mubr.bf16.gmra.mxu0 %v2530
      %v2592 = vpop.f32.mrf.mxu0
      %v2593 = vadd.f32 0.0, %v2592
      %v2594 = vpop.f32.mrf.mxu0
      %v2595 = vpop.f32.mrf.mxu0
      %v2596 = vadd.f32 0.0, %v2595
      %v2597 = vpop.f32.mrf.mxu0
      %2598 = vmatprep.mubr.bf16.mxu0 0
      %2599 = vmatmul.mubr.bf16.gmra.mxu0 %v2533
      %v2600 = vpop.f32.mrf.mxu0
      %v2601 = vadd.f32 0.0, %v2600
      %v2602 = vpop.f32.mrf.mxu0
      %v2603 = vpop.f32.mrf.mxu0
      %v2604 = vadd.f32 0.0, %v2603
      %v2605 = vpop.f32.mrf.mxu0
      %2606 = vmatprep.mubr.bf16.mxu0 0
      %2607 = vmatmul.mubr.bf16.gmra.mxu0 %v2536
      %v2608 = vpop.f32.mrf.mxu0
      %v2609 = vadd.f32 0.0, %v2608
      %v2610 = vpop.f32.mrf.mxu0
      %v2611 = vpop.f32.mrf.mxu0
      %v2612 = vadd.f32 0.0, %v2611
      %v2613 = vpop.f32.mrf.mxu0
      %2614 = vmatprep.mubr.bf16.mxu0 0
      %2615 = vmatmul.mubr.bf16.gmra.mxu0 %v2539
      %v2616 = vpop.f32.mrf.mxu0
      %v2617 = vadd.f32 0.0, %v2616
      %v2618 = vpop.f32.mrf.mxu0
      %v2619 = vpop.f32.mrf.mxu0
      %v2620 = vadd.f32 0.0, %v2619
      %v2621 = vpop.f32.mrf.mxu0
      %2622 = vmatprep.mubr.bf16.mxu0 0
      %2623 = vmatmul.mubr.bf16.gmra.mxu0 %v2542
      %v2624 = vpop.f32.mrf.mxu0
      %v2625 = vadd.f32 0.0, %v2624
      %v2626 = vpop.f32.mrf.mxu0
      %v2627 = vpop.f32.mrf.mxu0
      %v2628 = vadd.f32 0.0, %v2627
      %v2629 = vpop.f32.mrf.mxu0
      %2630 = vmatprep.mubr.bf16.mxu0 0
      %2631 = vmatmul.mubr.bf16.gmra.mxu0 %v2545
      %v2632 = vpop.f32.mrf.mxu0
      %v2633 = vadd.f32 0.0, %v2632
      %v2634 = vpop.f32.mrf.mxu0
      %v2635 = vpop.f32.mrf.mxu0
      %v2636 = vadd.f32 0.0, %v2635
      %v2637 = vpop.f32.mrf.mxu0
      %2638 = vmatprep.mubr.bf16.mxu0 0
      %2639 = vmatmul.mubr.bf16.gmra.mxu0 %v2548
      %v2640 = vpop.f32.mrf.mxu0
      %v2641 = vadd.f32 0.0, %v2640
      %v2642 = vpop.f32.mrf.mxu0
      %v2643 = vpop.f32.mrf.mxu0
      %v2644 = vadd.f32 0.0, %v2643
      %v2645 = vpop.f32.mrf.mxu0
      %2646 = vdwg.mxu0
      %v2647 = vadd.f32 %v2389, %v2585
      %v2648 = vadd.f32 %v2390, %v2588
      %v2649 = vadd.f32 %v2391, %v2593
      %v2650 = vadd.f32 %v2392, %v2596
      %v2651 = vadd.f32 %v2393, %v2601
      %v2652 = vadd.f32 %v2394, %v2604
      %v2653 = vadd.f32 %v2395, %v2609
      %v2654 = vadd.f32 %v2396, %v2612
      %v2655 = vadd.f32 %v2397, %v2617
      %v2656 = vadd.f32 %v2398, %v2620
      %v2657 = vadd.f32 %v2399, %v2625
      %v2658 = vadd.f32 %v2400, %v2628
      %v2659 = vadd.f32 %v2401, %v2633
      %v2660 = vadd.f32 %v2402, %v2636
      %v2661 = vadd.f32 %v2403, %v2641
      %v2662 = vadd.f32 %v2404, %v2644
      %v2664 = vlaneseq
      %v2665 = vshrl.u32 %v2664, 7
      %v2666 = vsub.s32 0, %v2665
      %v2667 = vrot.slane %v172, %v2666
      %v2669 = vadd.f32 %v2647, %v2667
      %v2670 = vadd.f32 %v2648, %v2667
      %v2671 = vadd.f32 %v2649, %v2667
      %v2672 = vadd.f32 %v2650, %v2667
      %v2673 = vadd.f32 %v2651, %v2667
      %v2674 = vadd.f32 %v2652, %v2667
      %v2675 = vadd.f32 %v2653, %v2667
      %v2676 = vadd.f32 %v2654, %v2667
      %v2677 = vadd.f32 %v2655, %v2667
      %v2678 = vadd.f32 %v2656, %v2667
      %v2679 = vadd.f32 %v2657, %v2667
      %v2680 = vadd.f32 %v2658, %v2667
      %v2681 = vadd.f32 %v2659, %v2667
      %v2682 = vadd.f32 %v2660, %v2667
      %v2683 = vadd.f32 %v2661, %v2667
      %v2684 = vadd.f32 %v2662, %v2667
      %vm2685 = vcmask 261120
      %2686 = vst.msk [vmem:[%s170] sm:$0xff] %vm2685, %v2669
      %2687 = vst.msk [vmem:[%s170 + $0x8] sm:$0xff] %vm2685, %v2670
      %2688 = vst.msk [vmem:[%s170 + $0x10] sm:$0xff] %vm2685, %v2671
      %2689 = vst.msk [vmem:[%s170 + $0x18] sm:$0xff] %vm2685, %v2672
      %2690 = vst.msk [vmem:[%s170 + $0x20] sm:$0xff] %vm2685, %v2673
      %2691 = vst.msk [vmem:[%s170 + $0x28] sm:$0xff] %vm2685, %v2674
      %2692 = vst.msk [vmem:[%s170 + $0x30] sm:$0xff] %vm2685, %v2675
      %2693 = vst.msk [vmem:[%s170 + $0x38] sm:$0xff] %vm2685, %v2676
      %2694 = vst.msk [vmem:[%s170 + $0x40] sm:$0xff] %vm2685, %v2677
      %2695 = vst.msk [vmem:[%s170 + $0x48] sm:$0xff] %vm2685, %v2678
      %2696 = vst.msk [vmem:[%s170 + $0x50] sm:$0xff] %vm2685, %v2679
      %2697 = vst.msk [vmem:[%s170 + $0x58] sm:$0xff] %vm2685, %v2680
      %2698 = vst.msk [vmem:[%s170 + $0x60] sm:$0xff] %vm2685, %v2681
      %2699 = vst.msk [vmem:[%s170 + $0x68] sm:$0xff] %vm2685, %v2682
      %2700 = vst.msk [vmem:[%s170 + $0x70] sm:$0xff] %vm2685, %v2683
      %2701 = vst.msk [vmem:[%s170 + $0x78] sm:$0xff] %vm2685, %v2684
      %p2702 = scmp.lt.s32.totalorder %s14, 1
      %s2703 = scalar_select %p2702, %s14, 1
      %s2704 = smul.addr %s2703, 16
      %s2705 = smul.addr %s2704, 8
      %s2706 = scalar_lea.vmem %s3, %s2705
      // Predicated region
      $region33: #{tpu_custom_call.1} parent=31 // pred_check
        %p2707 = pneg %p100
      $region34: #{tpu_custom_call.1} parent=31 // pred_check_branch
        %2709 = sbr.rel (%p2707) target = $region36
      $region35: #{tpu_custom_call.1} parent=31 // pred_region
        _
      $region36: #{tpu_custom_call.1} parent=31 // pred_fallthru
        _
    $region32: #{tpu_custom_call.1} parent=5 // pred_fallthru
      _
    %p2710 = scmp.le.s32.totalorder 2, %s9
    // Predicated region
    $region37: #{tpu_custom_call.1} parent=5 // pred_check
      %p2711 = pneg %p2710
    $region38: #{tpu_custom_call.1} parent=5 // pred_check_branch
      %2713 = sbr.rel (%p2711) target = $region40
    $region39: #{tpu_custom_call.1} parent=5 // pred_region
      %s2714 = ssub.s32 %s9, 2
      // Predicated region
      $region41: #{tpu_custom_call.1} parent=39 // pred_check
        %p2715 = pneg %p106
      $region42: #{tpu_custom_call.1} parent=39 // pred_check_branch
        %2717 = sbr.rel (%p2715) target = $region44
      $region43: #{tpu_custom_call.1} parent=39 // pred_region
        %p2718 = scmp.lt.s32.totalorder %s15, 1
        %s2719 = scalar_select %p2718, %s15, 1
        %s2720 = smul.addr %s2719, 16
        %s2721 = smul.addr %s2720, 8
        %s2722 = scalar_lea.vmem %s3, %s2721
      $region44: #{tpu_custom_call.1} parent=39 // pred_fallthru
        _
    $region40: #{tpu_custom_call.1} parent=5 // pred_fallthru
      _
  $region6: #{tpu_custom_call.1} parent=0 // loop_footer
    %s13 = sadd.s32 1, %s9
  $region7: #{tpu_custom_call.1} parent=0 // loop_footer_branch
    %8 = sbr.rel target = $region3
  $region8: #{tpu_custom_call.1} parent=0 // loop_exit
    _

</llo_original>
